<compile_context>
chip_gen: v7x
topology: tpu7x:2x2x1
jax: 0.10.0
libtpu: 0.0.40
codegen_flags: <defaults>
</compile_context>

<pallas_src>
import jax
import jax.numpy as jnp
from jax.experimental import pallas as pl
from jax.experimental.pallas import tpu as pltpu

H = 128              # d_model (stand-in for 768)
NHEAD = 8            # as in the module
HEAD_DIM = H // NHEAD
FF = 256             # dim_feedforward (stand-in for the torch default 2048)
NUM_LAYERS = 2
LN_EPS = 1e-5        # torch LayerNorm default
COS_EPS = 1e-8       # as in F.cosine_similarity(..., eps=1e-08)


# ------------------------------ Pallas kernels ------------------------------

def _layernorm(x, g, b):
    mu = jnp.mean(x, axis=-1, keepdims=True)
    xc = x - mu
    var = jnp.mean(xc * xc, axis=-1, keepdims=True)
    return xc * jax.lax.rsqrt(var + LN_EPS) * g + b


def _encoder_pool_kernel(x_ref, hm_ref,
                         wqkv_ref, bqkv_ref, wout_ref, bout_ref,
                         wff1_ref, bff1_ref, wff2_ref, bff2_ref,
                         ln1g_ref, ln1b_ref, ln2g_ref, ln2b_ref,
                         o_ref):
    """Full 2-layer post-norm TransformerEncoder + mean-pool for one sentence.

    x_ref : (1, B*S, H)  rows ordered b*S + s (B = attended axis, S = batch axis)
    hm_ref: (H, H)       block-diagonal per-head mask, pre-scaled by 1/sqrt(dh)
    o_ref : (1, B, H)    mean over S for each b
    """
    B = o_ref.shape[1]
    M = x_ref.shape[1]
    S = M // B
    n_layers = wqkv_ref.shape[0]

    x = x_ref[0]            # (M, H)
    hm = hm_ref[...]        # (H, H)

    for l in range(n_layers):
        w_qkv = wqkv_ref[l]; b_qkv = bqkv_ref[l]
        w_out = wout_ref[l]; b_out = bout_ref[l]
        w_ff1 = wff1_ref[l]; b_ff1 = bff1_ref[l]
        w_ff2 = wff2_ref[l]; b_ff2 = bff2_ref[l]
        g1 = ln1g_ref[l]; be1 = ln1b_ref[l]
        g2 = ln2g_ref[l]; be2 = ln2b_ref[l]

        # ---- fused QKV projection (single lane-dense MXU op) ----
        qkv = jnp.dot(x, w_qkv, preferred_element_type=jnp.float32) + b_qkv
        q = qkv[:, 0:H]
        k = qkv[:, H:2 * H]
        v = qkv[:, 2 * H:3 * H]

        # per-b (attended-position) row blocks, each (S, H), sublane-aligned
        qs = [q[b * S:(b + 1) * S, :] for b in range(B)]
        ks = [k[b * S:(b + 1) * S, :] for b in range(B)]
        vs = [v[b * S:(b + 1) * S, :] for b in range(B)]

        # ---- attention over the tiny B axis, kept lane-dense ----
        # expanded per-head scores: (q_b * k_b') @ hm replicates each head's
        # scaled dot product across that head's HEAD_DIM lanes.
        prod = jnp.concatenate(
            [qs[b] * ks[bp] for b in range(B) for bp in range(B)], axis=0)
        sc = jnp.dot(prod, hm, preferred_element_type=jnp.float32)  # (B*B*S, H)

        ctx_rows = []
        for b in range(B):
            s_list = [sc[(b * B + bp) * S:(b * B + bp + 1) * S, :]
                      for bp in range(B)]
            m = s_list[0]
            for t in s_list[1:]:
                m = jnp.maximum(m, t)
            p_list = [jnp.exp(t - m) for t in s_list]
            denom = p_list[0]
            for t in p_list[1:]:
                denom = denom + t
            inv = pl.reciprocal(denom, approx=True)       # EUP slot
            ctx = (p_list[0] * inv) * vs[0]
            for bp in range(1, B):
                ctx = ctx + (p_list[bp] * inv) * vs[bp]
            ctx_rows.append(ctx)
        ctx2d = jnp.concatenate(ctx_rows, axis=0)          # (M, H)

        # ---- post-norm TransformerEncoderLayer tail ----
        # TODO(synk): dropout (p=0.1) treated as identity (eval-mode semantics).
        attn = jnp.dot(ctx2d, w_out, preferred_element_type=jnp.float32) + b_out
        h = _layernorm(x + attn, g1, be1)
        ff = jnp.maximum(
            jnp.dot(h, w_ff1, preferred_element_type=jnp.float32) + b_ff1, 0.0)
        ff = jnp.dot(ff, w_ff2, preferred_element_type=jnp.float32) + b_ff2
        x = _layernorm(h + ff, g2, be2)

    # ---- torch.mean(SA, dim=1): mean over S for each b ----
    pooled = [jnp.mean(x[b * S:(b + 1) * S, :], axis=0, keepdims=True)
              for b in range(B)]
    o_ref[0] = jnp.concatenate(pooled, axis=0)             # (B, H)


def _cosine_kernel(pooled_ref, o_ref):
    # pooled: (2, B, H)  ->  cosine over H between sentence A and B: (B, 1)
    pa = pooled_ref[0]
    pb = pooled_ref[1]
    dot = jnp.sum(pa * pb, axis=-1, keepdims=True)
    # F.cosine_similarity clamps each norm independently.
    na = jnp.maximum(jnp.sqrt(jnp.sum(pa * pa, axis=-1, keepdims=True)), COS_EPS)
    nb = jnp.maximum(jnp.sqrt(jnp.sum(pb * pb, axis=-1, keepdims=True)), COS_EPS)
    o_ref[...] = dot * pl.reciprocal(na, approx=True) * pl.reciprocal(nb, approx=True)


# ------------------------------ wrappers --------------------------------------

def _full_spec(shape):
    nd = len(shape)
    return pl.BlockSpec(shape, lambda s, nd=nd: (0,) * nd)


@jax.jit
def sentence_similarity(emb_a, emb_b, prepped):
    # TODO(synk): BERT tokenizer + pretrained BERT have no Pallas equivalent;
    # their output embeddings are taken as the kernel inputs.
    B, S, _ = emb_a.shape
    M = B * S
    x = jnp.stack([emb_a, emb_b]).reshape(2, M, H)   # (sentence, B*S, H)

    in_specs = [pl.BlockSpec((1, M, H), lambda s: (s, 0, 0))]
    in_specs += [_full_spec(w.shape) for w in prepped]

    pooled = pl.pallas_call(
        _encoder_pool_kernel,
        out_shape=jax.ShapeDtypeStruct((2, B, H), jnp.float32),
        grid=(2,),                                    # sentence A / sentence B
        in_specs=in_specs,
        out_specs=pl.BlockSpec((1, B, H), lambda s: (s, 0, 0)),
        compiler_params=pltpu.CompilerParams(dimension_semantics=("parallel",)),
    )(x, *prepped)

    return pl.pallas_call(
        _cosine_kernel,
        out_shape=jax.ShapeDtypeStruct((B, 1), jnp.float32),
    )(pooled)


# ------------------------------ params ----------------------------------------

def init_params(key):
    """Per-layer params in PyTorch (out, in) convention."""
    params = []
    for _ in range(NUM_LAYERS):
        key, k1, k2, k3, k4 = jax.random.split(key, 5)
        params.append({
            "in_proj_w": 0.02 * jax.random.normal(k1, (3 * H, H), jnp.float32),
            "in_proj_b": jnp.zeros((3 * H,), jnp.float32),
            "out_proj_w": 0.02 * jax.random.normal(k2, (H, H), jnp.float32),
            "out_proj_b": jnp.zeros((H,), jnp.float32),
            "lin1_w": 0.02 * jax.random.normal(k3, (FF, H), jnp.float32),
            "lin1_b": jnp.zeros((FF,), jnp.float32),
            "lin2_w": 0.02 * jax.random.normal(k4, (H, FF), jnp.float32),
            "lin2_b": jnp.zeros((H,), jnp.float32),
            "ln1_w": jnp.ones((H,), jnp.float32),
            "ln1_b": jnp.zeros((H,), jnp.float32),
            "ln2_w": jnp.ones((H,), jnp.float32),
            "ln2_b": jnp.zeros((H,), jnp.float32),
        })
    return params


def prepare_params(params):
    """One-time preprocessing (outside the jitted forward): transpose weights to
    MXU-ready (K, N), reshape biases/LN params to (1, N), stack across layers,
    and build the scaled block-diagonal per-head segment-sum matrix."""
    def stack(fn):
        return jnp.stack([fn(p) for p in params])

    w_qkv = stack(lambda p: jnp.transpose(p["in_proj_w"]))    # (L, H, 3H)
    b_qkv = stack(lambda p: p["in_proj_b"].reshape(1, 3 * H))
    w_out = stack(lambda p: jnp.transpose(p["out_proj_w"]))   # (L, H, H)
    b_out = stack(lambda p: p["out_proj_b"].reshape(1, H))
    w_ff1 = stack(lambda p: jnp.transpose(p["lin1_w"]))       # (L, H, FF)
    b_ff1 = stack(lambda p: p["lin1_b"].reshape(1, FF))
    w_ff2 = stack(lambda p: jnp.transpose(p["lin2_w"]))       # (L, FF, H)
    b_ff2 = stack(lambda p: p["lin2_b"].reshape(1, H))
    ln1_g = stack(lambda p: p["ln1_w"].reshape(1, H))
    ln1_b = stack(lambda p: p["ln1_b"].reshape(1, H))
    ln2_g = stack(lambda p: p["ln2_w"].reshape(1, H))
    ln2_b = stack(lambda p: p["ln2_b"].reshape(1, H))

    ids = jnp.arange(H, dtype=jnp.int32) // HEAD_DIM
    head_mask = (ids[:, None] == ids[None, :]).astype(jnp.float32) / (HEAD_DIM ** 0.5)

    return (head_mask, w_qkv, b_qkv, w_out, b_out, w_ff1, b_ff1, w_ff2, b_ff2,
            ln1_g, ln1_b, ln2_g, ln2_b)


# ------------------------------ main -------------------------------------------

if __name__ == "__main__":
    key = jax.random.PRNGKey(0)
    ka, kb, kp = jax.random.split(key, 3)
    B, S = 2, 8  # (B, S, H) "BERT embeddings" for sentence A and B
    emb_a = jax.random.normal(ka, (B, S, H), jnp.float32)
    emb_b = jax.random.normal(kb, (B, S, H), jnp.float32)

    params = init_params(kp)
    prepped = prepare_params(params)      # one-time weight prep (not per forward)

    sim = sentence_similarity(emb_a, emb_b, prepped)   # (B, 1) cosine similarity
    jax.block_until_ready(sim)
    assert sim.shape == (B, 1)
    print("KERNEL_OK")
</pallas_src>

<mosaic_0001>
module attributes {stable_mosaic.version = 11 : i64} {
  func.func @_cosine_kernel(%arg0: memref<2x2x128xf32, #tpu.memory_space<vmem>>, %arg1: memref<2x1xf32, #tpu.memory_space<vmem>>) attributes {dimension_semantics = [], scalar_prefetch = 0 : i64, scratch_operands = 0 : i64, tpu.core_type = #tpu.core_type<tc>} {
    %c0 = arith.constant 0 : index
    %c0_0 = arith.constant 0 : index
    %c0_1 = arith.constant 0 : index
    %0 = vector.load %arg0[%c0, %c0_0, %c0_1] : memref<2x2x128xf32, #tpu.memory_space<vmem>>, vector<1x2x128xf32>
    %1 = vector.shape_cast %0 : vector<1x2x128xf32> to vector<2x128xf32>
    %c1 = arith.constant 1 : index
    %c0_2 = arith.constant 0 : index
    %c0_3 = arith.constant 0 : index
    %2 = vector.load %arg0[%c1, %c0_2, %c0_3] : memref<2x2x128xf32, #tpu.memory_space<vmem>>, vector<1x2x128xf32>
    %3 = vector.shape_cast %2 : vector<1x2x128xf32> to vector<2x128xf32>
    %4 = arith.mulf %1, %3 : vector<2x128xf32>
    %cst = arith.constant dense<0.000000e+00> : vector<2xf32>
    %5 = vector.multi_reduction <add>, %4, %cst [1] : vector<2x128xf32> to vector<2xf32>
    %6 = vector.shape_cast %5 : vector<2xf32> to vector<2x1xf32>
    %7 = arith.mulf %1, %1 : vector<2x128xf32>
    %cst_4 = arith.constant dense<0.000000e+00> : vector<2xf32>
    %8 = vector.multi_reduction <add>, %7, %cst_4 [1] : vector<2x128xf32> to vector<2xf32>
    %9 = vector.shape_cast %8 : vector<2xf32> to vector<2x1xf32>
    %10 = math.sqrt %9 : vector<2x1xf32>
    %cst_5 = arith.constant 9.99999993E-9 : f32
    %11 = vector.broadcast %cst_5 : f32 to vector<2x1xf32>
    %12 = arith.maximumf %10, %11 : vector<2x1xf32>
    %13 = arith.mulf %3, %3 : vector<2x128xf32>
    %cst_6 = arith.constant dense<0.000000e+00> : vector<2xf32>
    %14 = vector.multi_reduction <add>, %13, %cst_6 [1] : vector<2x128xf32> to vector<2xf32>
    %15 = vector.shape_cast %14 : vector<2xf32> to vector<2x1xf32>
    %16 = math.sqrt %15 : vector<2x1xf32>
    %cst_7 = arith.constant 9.99999993E-9 : f32
    %17 = vector.broadcast %cst_7 : f32 to vector<2x1xf32>
    %18 = arith.maximumf %16, %17 : vector<2x1xf32>
    %19 = tpu.reciprocal %12 {approx = true} : vector<2x1xf32> -> vector<2x1xf32>
    %20 = arith.mulf %6, %19 : vector<2x1xf32>
    %21 = tpu.reciprocal %18 {approx = true} : vector<2x1xf32> -> vector<2x1xf32>
    %22 = arith.mulf %20, %21 : vector<2x1xf32>
    %c0_8 = arith.constant 0 : index
    %c0_9 = arith.constant 0 : index
    %23 = vector.load %arg1[%c0_8, %c0_9] : memref<2x1xf32, #tpu.memory_space<vmem>>, vector<2x1xf32>
    tpu.vector_store %arg1[%c0_8, %c0_9], %22 {strides = array<i32>} : memref<2x1xf32, #tpu.memory_space<vmem>>, vector<2x1xf32>,
    return
  }
}

module attributes {stable_mosaic.version = 11 : i64} {
  func.func @_encoder_pool_kernel(%arg0: i32, %arg1: memref<1x16x128xf32, #tpu.memory_space<vmem>>, %arg2: memref<128x128xf32, #tpu.memory_space<vmem>>, %arg3: memref<2x128x384xf32, #tpu.memory_space<vmem>>, %arg4: memref<2x1x384xf32, #tpu.memory_space<vmem>>, %arg5: memref<2x128x128xf32, #tpu.memory_space<vmem>>, %arg6: memref<2x1x128xf32, #tpu.memory_space<vmem>>, %arg7: memref<2x128x256xf32, #tpu.memory_space<vmem>>, %arg8: memref<2x1x256xf32, #tpu.memory_space<vmem>>, %arg9: memref<2x256x128xf32, #tpu.memory_space<vmem>>, %arg10: memref<2x1x128xf32, #tpu.memory_space<vmem>>, %arg11: memref<2x1x128xf32, #tpu.memory_space<vmem>>, %arg12: memref<2x1x128xf32, #tpu.memory_space<vmem>>, %arg13: memref<2x1x128xf32, #tpu.memory_space<vmem>>, %arg14: memref<2x1x128xf32, #tpu.memory_space<vmem>>, %arg15: memref<1x2x128xf32, #tpu.memory_space<vmem>>) attributes {dimension_semantics = [#tpu.dimension_semantics<parallel>], iteration_bounds = array<i64: 2>, scalar_prefetch = 0 : i64, scratch_operands = 0 : i64, tpu.core_type = #tpu.core_type<tc>, window_params = [{transform_indices = @transform_0, window_bounds = array<i64: 1, 16, 128>}, {pipeline_mode = #tpu.pipeline_mode<synchronous>, transform_indices = @transform_1, window_bounds = array<i64: 128, 128>}, {pipeline_mode = #tpu.pipeline_mode<synchronous>, transform_indices = @transform_2, window_bounds = array<i64: 2, 128, 384>}, {pipeline_mode = #tpu.pipeline_mode<synchronous>, transform_indices = @transform_3, window_bounds = array<i64: 2, 1, 384>}, {pipeline_mode = #tpu.pipeline_mode<synchronous>, transform_indices = @transform_4, window_bounds = array<i64: 2, 128, 128>}, {pipeline_mode = #tpu.pipeline_mode<synchronous>, transform_indices = @transform_5, window_bounds = array<i64: 2, 1, 128>}, {pipeline_mode = #tpu.pipeline_mode<synchronous>, transform_indices = @transform_6, window_bounds = array<i64: 2, 128, 256>}, {pipeline_mode = #tpu.pipeline_mode<synchronous>, transform_indices = @transform_7, window_bounds = array<i64: 2, 1, 256>}, {pipeline_mode = #tpu.pipeline_mode<synchronous>, transform_indices = @transform_8, window_bounds = array<i64: 2, 256, 128>}, {pipeline_mode = #tpu.pipeline_mode<synchronous>, transform_indices = @transform_9, window_bounds = array<i64: 2, 1, 128>}, {pipeline_mode = #tpu.pipeline_mode<synchronous>, transform_indices = @transform_10, window_bounds = array<i64: 2, 1, 128>}, {pipeline_mode = #tpu.pipeline_mode<synchronous>, transform_indices = @transform_11, window_bounds = array<i64: 2, 1, 128>}, {pipeline_mode = #tpu.pipeline_mode<synchronous>, transform_indices = @transform_12, window_bounds = array<i64: 2, 1, 128>}, {pipeline_mode = #tpu.pipeline_mode<synchronous>, transform_indices = @transform_13, window_bounds = array<i64: 2, 1, 128>}, {transform_indices = @transform_14, window_bounds = array<i64: 1, 2, 128>}]} {
    %c0 = arith.constant 0 : index
    %c0_0 = arith.constant 0 : index
    %c0_1 = arith.constant 0 : index
    %0 = vector.load %arg1[%c0, %c0_0, %c0_1] : memref<1x16x128xf32, #tpu.memory_space<vmem>>, vector<1x16x128xf32>
    %1 = vector.shape_cast %0 : vector<1x16x128xf32> to vector<16x128xf32>
    %c0_2 = arith.constant 0 : index
    %c0_3 = arith.constant 0 : index
    %2 = vector.load %arg2[%c0_2, %c0_3] : memref<128x128xf32, #tpu.memory_space<vmem>>, vector<128x128xf32>
    %c0_4 = arith.constant 0 : index
    %c0_5 = arith.constant 0 : index
    %c0_6 = arith.constant 0 : index
    %3 = vector.load %arg3[%c0_4, %c0_5, %c0_6] : memref<2x128x384xf32, #tpu.memory_space<vmem>>, vector<1x128x384xf32>
    %4 = vector.shape_cast %3 : vector<1x128x384xf32> to vector<128x384xf32>
    %c0_7 = arith.constant 0 : index
    %c0_8 = arith.constant 0 : index
    %c0_9 = arith.constant 0 : index
    %5 = vector.load %arg4[%c0_7, %c0_8, %c0_9] : memref<2x1x384xf32, #tpu.memory_space<vmem>>, vector<1x1x384xf32>
    %6 = vector.shape_cast %5 : vector<1x1x384xf32> to vector<1x384xf32>
    %c0_10 = arith.constant 0 : index
    %c0_11 = arith.constant 0 : index
    %c0_12 = arith.constant 0 : index
    %7 = vector.load %arg5[%c0_10, %c0_11, %c0_12] : memref<2x128x128xf32, #tpu.memory_space<vmem>>, vector<1x128x128xf32>
    %8 = vector.shape_cast %7 : vector<1x128x128xf32> to vector<128x128xf32>
    %c0_13 = arith.constant 0 : index
    %c0_14 = arith.constant 0 : index
    %c0_15 = arith.constant 0 : index
    %9 = vector.load %arg6[%c0_13, %c0_14, %c0_15] : memref<2x1x128xf32, #tpu.memory_space<vmem>>, vector<1x1x128xf32>
    %10 = vector.shape_cast %9 : vector<1x1x128xf32> to vector<1x128xf32>
    %c0_16 = arith.constant 0 : index
    %c0_17 = arith.constant 0 : index
    %c0_18 = arith.constant 0 : index
    %11 = vector.load %arg7[%c0_16, %c0_17, %c0_18] : memref<2x128x256xf32, #tpu.memory_space<vmem>>, vector<1x128x256xf32>
    %12 = vector.shape_cast %11 : vector<1x128x256xf32> to vector<128x256xf32>
    %c0_19 = arith.constant 0 : index
    %c0_20 = arith.constant 0 : index
    %c0_21 = arith.constant 0 : index
    %13 = vector.load %arg8[%c0_19, %c0_20, %c0_21] : memref<2x1x256xf32, #tpu.memory_space<vmem>>, vector<1x1x256xf32>
    %14 = vector.shape_cast %13 : vector<1x1x256xf32> to vector<1x256xf32>
    %c0_22 = arith.constant 0 : index
    %c0_23 = arith.constant 0 : index
    %c0_24 = arith.constant 0 : index
    %15 = vector.load %arg9[%c0_22, %c0_23, %c0_24] : memref<2x256x128xf32, #tpu.memory_space<vmem>>, vector<1x256x128xf32>
    %16 = vector.shape_cast %15 : vector<1x256x128xf32> to vector<256x128xf32>
    %c0_25 = arith.constant 0 : index
    %c0_26 = arith.constant 0 : index
    %c0_27 = arith.constant 0 : index
    %17 = vector.load %arg10[%c0_25, %c0_26, %c0_27] : memref<2x1x128xf32, #tpu.memory_space<vmem>>, vector<1x1x128xf32>
    %18 = vector.shape_cast %17 : vector<1x1x128xf32> to vector<1x128xf32>
    %c0_28 = arith.constant 0 : index
    %c0_29 = arith.constant 0 : index
    %c0_30 = arith.constant 0 : index
    %19 = vector.load %arg11[%c0_28, %c0_29, %c0_30] : memref<2x1x128xf32, #tpu.memory_space<vmem>>, vector<1x1x128xf32>
    %20 = vector.shape_cast %19 : vector<1x1x128xf32> to vector<1x128xf32>
    %c0_31 = arith.constant 0 : index
    %c0_32 = arith.constant 0 : index
    %c0_33 = arith.constant 0 : index
    %21 = vector.load %arg12[%c0_31, %c0_32, %c0_33] : memref<2x1x128xf32, #tpu.memory_space<vmem>>, vector<1x1x128xf32>
    %22 = vector.shape_cast %21 : vector<1x1x128xf32> to vector<1x128xf32>
    %c0_34 = arith.constant 0 : index
    %c0_35 = arith.constant 0 : index
    %c0_36 = arith.constant 0 : index
    %23 = vector.load %arg13[%c0_34, %c0_35, %c0_36] : memref<2x1x128xf32, #tpu.memory_space<vmem>>, vector<1x1x128xf32>
    %24 = vector.shape_cast %23 : vector<1x1x128xf32> to vector<1x128xf32>
    %c0_37 = arith.constant 0 : index
    %c0_38 = arith.constant 0 : index
    %c0_39 = arith.constant 0 : index
    %25 = vector.load %arg14[%c0_37, %c0_38, %c0_39] : memref<2x1x128xf32, #tpu.memory_space<vmem>>, vector<1x1x128xf32>
    %26 = vector.shape_cast %25 : vector<1x1x128xf32> to vector<1x128xf32>
    %cst = arith.constant dense<0.000000e+00> : vector<16x384xf32>
    %27 = tpu.matmul %1, %4, %cst {dimension_numbers = #tpu.dot_dimension_numbers<[1], [0], [0], [1], [0, 0, 1, 1], [], []>} : vector<16x128xf32>, vector<128x384xf32>, vector<16x384xf32> -> vector<16x384xf32>
    %28 = vector.broadcast %6 : vector<1x384xf32> to vector<16x384xf32>
    %29 = arith.addf %27, %28 : vector<16x384xf32>
    %30 = vector.extract_strided_slice %29 {offsets = [0, 0], sizes = [16, 128], strides = [1, 1]} : vector<16x384xf32> to vector<16x128xf32>
    %31 = vector.extract_strided_slice %29 {offsets = [0, 128], sizes = [16, 128], strides = [1, 1]} : vector<16x384xf32> to vector<16x128xf32>
    %32 = vector.extract_strided_slice %29 {offsets = [0, 256], sizes = [16, 128], strides = [1, 1]} : vector<16x384xf32> to vector<16x128xf32>
    %33 = vector.extract_strided_slice %30 {offsets = [0, 0], sizes = [8, 128], strides = [1, 1]} : vector<16x128xf32> to vector<8x128xf32>
    %34 = vector.extract_strided_slice %30 {offsets = [8, 0], sizes = [8, 128], strides = [1, 1]} : vector<16x128xf32> to vector<8x128xf32>
    %35 = vector.extract_strided_slice %31 {offsets = [0, 0], sizes = [8, 128], strides = [1, 1]} : vector<16x128xf32> to vector<8x128xf32>
    %36 = vector.extract_strided_slice %31 {offsets = [8, 0], sizes = [8, 128], strides = [1, 1]} : vector<16x128xf32> to vector<8x128xf32>
    %37 = vector.extract_strided_slice %32 {offsets = [0, 0], sizes = [8, 128], strides = [1, 1]} : vector<16x128xf32> to vector<8x128xf32>
    %38 = vector.extract_strided_slice %32 {offsets = [8, 0], sizes = [8, 128], strides = [1, 1]} : vector<16x128xf32> to vector<8x128xf32>
    %39 = arith.mulf %33, %35 : vector<8x128xf32>
    %40 = arith.mulf %33, %36 : vector<8x128xf32>
    %41 = arith.mulf %34, %35 : vector<8x128xf32>
    %42 = arith.mulf %34, %36 : vector<8x128xf32>
    %43 = tpu.concatenate %39, %40, %41, %42 in 0 : vector<8x128xf32>, vector<8x128xf32>, vector<8x128xf32>, vector<8x128xf32> -> vector<32x128xf32>
    %cst_40 = arith.constant dense<0.000000e+00> : vector<32x128xf32>
    %44 = tpu.matmul %43, %2, %cst_40 {dimension_numbers = #tpu.dot_dimension_numbers<[1], [0], [0], [1], [0, 0, 1, 1], [], []>} : vector<32x128xf32>, vector<128x128xf32>, vector<32x128xf32> -> vector<32x128xf32>
    %45 = vector.extract_strided_slice %44 {offsets = [0, 0], sizes = [8, 128], strides = [1, 1]} : vector<32x128xf32> to vector<8x128xf32>
    %46 = vector.extract_strided_slice %44 {offsets = [8, 0], sizes = [8, 128], strides = [1, 1]} : vector<32x128xf32> to vector<8x128xf32>
    %47 = arith.maximumf %45, %46 : vector<8x128xf32>
    %48 = arith.subf %45, %47 : vector<8x128xf32>
    %49 = math.exp %48 : vector<8x128xf32>
    %50 = arith.subf %46, %47 : vector<8x128xf32>
    %51 = math.exp %50 : vector<8x128xf32>
    %52 = arith.addf %49, %51 : vector<8x128xf32>
    %53 = tpu.reciprocal %52 {approx = true} : vector<8x128xf32> -> vector<8x128xf32>
    %54 = arith.mulf %49, %53 : vector<8x128xf32>
    %55 = arith.mulf %54, %37 : vector<8x128xf32>
    %56 = arith.mulf %51, %53 : vector<8x128xf32>
    %57 = arith.mulf %56, %38 : vector<8x128xf32>
    %58 = arith.addf %55, %57 : vector<8x128xf32>
    %59 = vector.extract_strided_slice %44 {offsets = [16, 0], sizes = [8, 128], strides = [1, 1]} : vector<32x128xf32> to vector<8x128xf32>
    %60 = vector.extract_strided_slice %44 {offsets = [24, 0], sizes = [8, 128], strides = [1, 1]} : vector<32x128xf32> to vector<8x128xf32>
    %61 = arith.maximumf %59, %60 : vector<8x128xf32>
    %62 = arith.subf %59, %61 : vector<8x128xf32>
    %63 = math.exp %62 : vector<8x128xf32>
    %64 = arith.subf %60, %61 : vector<8x128xf32>
    %65 = math.exp %64 : vector<8x128xf32>
    %66 = arith.addf %63, %65 : vector<8x128xf32>
    %67 = tpu.reciprocal %66 {approx = true} : vector<8x128xf32> -> vector<8x128xf32>
    %68 = arith.mulf %63, %67 : vector<8x128xf32>
    %69 = arith.mulf %68, %37 : vector<8x128xf32>
    %70 = arith.mulf %65, %67 : vector<8x128xf32>
    %71 = arith.mulf %70, %38 : vector<8x128xf32>
    %72 = arith.addf %69, %71 : vector<8x128xf32>
    %73 = tpu.concatenate %58, %72 in 0 : vector<8x128xf32>, vector<8x128xf32> -> vector<16x128xf32>
    %cst_41 = arith.constant dense<0.000000e+00> : vector<16x128xf32>
    %74 = tpu.matmul %73, %8, %cst_41 {dimension_numbers = #tpu.dot_dimension_numbers<[1], [0], [0], [1], [0, 0, 1, 1], [], []>} : vector<16x128xf32>, vector<128x128xf32>, vector<16x128xf32> -> vector<16x128xf32>
    %75 = vector.broadcast %10 : vector<1x128xf32> to vector<16x128xf32>
    %76 = arith.addf %74, %75 : vector<16x128xf32>
    %77 = arith.addf %1, %76 : vector<16x128xf32>
    %cst_42 = arith.constant dense<0.000000e+00> : vector<16xf32>
    %78 = vector.multi_reduction <add>, %77, %cst_42 [1] : vector<16x128xf32> to vector<16xf32>
    %79 = vector.shape_cast %78 : vector<16xf32> to vector<16x1xf32>
    %cst_43 = arith.constant 1.280000e+02 : f32
    %80 = vector.broadcast %cst_43 : f32 to vector<16x1xf32>
    %81 = arith.divf %79, %80 : vector<16x1xf32>
    %82 = vector.broadcast %81 : vector<16x1xf32> to vector<16x128xf32>
    %83 = arith.subf %77, %82 : vector<16x128xf32>
    %84 = arith.mulf %83, %83 : vector<16x128xf32>
    %cst_44 = arith.constant dense<0.000000e+00> : vector<16xf32>
    %85 = vector.multi_reduction <add>, %84, %cst_44 [1] : vector<16x128xf32> to vector<16xf32>
    %86 = vector.shape_cast %85 : vector<16xf32> to vector<16x1xf32>
    %cst_45 = arith.constant 1.280000e+02 : f32
    %87 = vector.broadcast %cst_45 : f32 to vector<16x1xf32>
    %88 = arith.divf %86, %87 : vector<16x1xf32>
    %cst_46 = arith.constant 9.99999974E-6 : f32
    %89 = vector.broadcast %cst_46 : f32 to vector<16x1xf32>
    %90 = arith.addf %88, %89 : vector<16x1xf32>
    %91 = math.rsqrt %90 : vector<16x1xf32>
    %92 = vector.broadcast %91 : vector<16x1xf32> to vector<16x128xf32>
    %93 = arith.mulf %83, %92 : vector<16x128xf32>
    %94 = vector.broadcast %20 : vector<1x128xf32> to vector<16x128xf32>
    %95 = arith.mulf %93, %94 : vector<16x128xf32>
    %96 = vector.broadcast %22 : vector<1x128xf32> to vector<16x128xf32>
    %97 = arith.addf %95, %96 : vector<16x128xf32>
    %cst_47 = arith.constant dense<0.000000e+00> : vector<16x256xf32>
    %98 = tpu.matmul %97, %12, %cst_47 {dimension_numbers = #tpu.dot_dimension_numbers<[1], [0], [0], [1], [0, 0, 1, 1], [], []>} : vector<16x128xf32>, vector<128x256xf32>, vector<16x256xf32> -> vector<16x256xf32>
    %99 = vector.broadcast %14 : vector<1x256xf32> to vector<16x256xf32>
    %100 = arith.addf %98, %99 : vector<16x256xf32>
    %cst_48 = arith.constant 0.000000e+00 : f32
    %101 = vector.broadcast %cst_48 : f32 to vector<16x256xf32>
    %102 = arith.maximumf %100, %101 : vector<16x256xf32>
    %cst_49 = arith.constant dense<0.000000e+00> : vector<16x128xf32>
    %103 = tpu.matmul %102, %16, %cst_49 {dimension_numbers = #tpu.dot_dimension_numbers<[1], [0], [0], [1], [0, 0, 1, 1], [], []>} : vector<16x256xf32>, vector<256x128xf32>, vector<16x128xf32> -> vector<16x128xf32>
    %104 = vector.broadcast %18 : vector<1x128xf32> to vector<16x128xf32>
    %105 = arith.addf %103, %104 : vector<16x128xf32>
    %106 = arith.addf %97, %105 : vector<16x128xf32>
    %cst_50 = arith.constant dense<0.000000e+00> : vector<16xf32>
    %107 = vector.multi_reduction <add>, %106, %cst_50 [1] : vector<16x128xf32> to vector<16xf32>
    %108 = vector.shape_cast %107 : vector<16xf32> to vector<16x1xf32>
    %cst_51 = arith.constant 1.280000e+02 : f32
    %109 = vector.broadcast %cst_51 : f32 to vector<16x1xf32>
    %110 = arith.divf %108, %109 : vector<16x1xf32>
    %111 = vector.broadcast %110 : vector<16x1xf32> to vector<16x128xf32>
    %112 = arith.subf %106, %111 : vector<16x128xf32>
    %113 = arith.mulf %112, %112 : vector<16x128xf32>
    %cst_52 = arith.constant dense<0.000000e+00> : vector<16xf32>
    %114 = vector.multi_reduction <add>, %113, %cst_52 [1] : vector<16x128xf32> to vector<16xf32>
    %115 = vector.shape_cast %114 : vector<16xf32> to vector<16x1xf32>
    %cst_53 = arith.constant 1.280000e+02 : f32
    %116 = vector.broadcast %cst_53 : f32 to vector<16x1xf32>
    %117 = arith.divf %115, %116 : vector<16x1xf32>
    %cst_54 = arith.constant 9.99999974E-6 : f32
    %118 = vector.broadcast %cst_54 : f32 to vector<16x1xf32>
    %119 = arith.addf %117, %118 : vector<16x1xf32>
    %120 = math.rsqrt %119 : vector<16x1xf32>
    %121 = vector.broadcast %120 : vector<16x1xf32> to vector<16x128xf32>
    %122 = arith.mulf %112, %121 : vector<16x128xf32>
    %123 = vector.broadcast %24 : vector<1x128xf32> to vector<16x128xf32>
    %124 = arith.mulf %122, %123 : vector<16x128xf32>
    %125 = vector.broadcast %26 : vector<1x128xf32> to vector<16x128xf32>
    %126 = arith.addf %124, %125 : vector<16x128xf32>
    %c1 = arith.constant 1 : index
    %c0_55 = arith.constant 0 : index
    %c0_56 = arith.constant 0 : index
    %127 = vector.load %arg3[%c1, %c0_55, %c0_56] : memref<2x128x384xf32, #tpu.memory_space<vmem>>, vector<1x128x384xf32>
    %128 = vector.shape_cast %127 : vector<1x128x384xf32> to vector<128x384xf32>
    %c1_57 = arith.constant 1 : index
    %c0_58 = arith.constant 0 : index
    %c0_59 = arith.constant 0 : index
    %129 = vector.load %arg4[%c1_57, %c0_58, %c0_59] : memref<2x1x384xf32, #tpu.memory_space<vmem>>, vector<1x1x384xf32>
    %130 = vector.shape_cast %129 : vector<1x1x384xf32> to vector<1x384xf32>
    %c1_60 = arith.constant 1 : index
    %c0_61 = arith.constant 0 : index
    %c0_62 = arith.constant 0 : index
    %131 = vector.load %arg5[%c1_60, %c0_61, %c0_62] : memref<2x128x128xf32, #tpu.memory_space<vmem>>, vector<1x128x128xf32>
    %132 = vector.shape_cast %131 : vector<1x128x128xf32> to vector<128x128xf32>
    %c1_63 = arith.constant 1 : index
    %c0_64 = arith.constant 0 : index
    %c0_65 = arith.constant 0 : index
    %133 = vector.load %arg6[%c1_63, %c0_64, %c0_65] : memref<2x1x128xf32, #tpu.memory_space<vmem>>, vector<1x1x128xf32>
    %134 = vector.shape_cast %133 : vector<1x1x128xf32> to vector<1x128xf32>
    %c1_66 = arith.constant 1 : index
    %c0_67 = arith.constant 0 : index
    %c0_68 = arith.constant 0 : index
    %135 = vector.load %arg7[%c1_66, %c0_67, %c0_68] : memref<2x128x256xf32, #tpu.memory_space<vmem>>, vector<1x128x256xf32>
    %136 = vector.shape_cast %135 : vector<1x128x256xf32> to vector<128x256xf32>
    %c1_69 = arith.constant 1 : index
    %c0_70 = arith.constant 0 : index
    %c0_71 = arith.constant 0 : index
    %137 = vector.load %arg8[%c1_69, %c0_70, %c0_71] : memref<2x1x256xf32, #tpu.memory_space<vmem>>, vector<1x1x256xf32>
    %138 = vector.shape_cast %137 : vector<1x1x256xf32> to vector<1x256xf32>
    %c1_72 = arith.constant 1 : index
    %c0_73 = arith.constant 0 : index
    %c0_74 = arith.constant 0 : index
    %139 = vector.load %arg9[%c1_72, %c0_73, %c0_74] : memref<2x256x128xf32, #tpu.memory_space<vmem>>, vector<1x256x128xf32>
    %140 = vector.shape_cast %139 : vector<1x256x128xf32> to vector<256x128xf32>
    %c1_75 = arith.constant 1 : index
    %c0_76 = arith.constant 0 : index
    %c0_77 = arith.constant 0 : index
    %141 = vector.load %arg10[%c1_75, %c0_76, %c0_77] : memref<2x1x128xf32, #tpu.memory_space<vmem>>, vector<1x1x128xf32>
    %142 = vector.shape_cast %141 : vector<1x1x128xf32> to vector<1x128xf32>
    %c1_78 = arith.constant 1 : index
    %c0_79 = arith.constant 0 : index
    %c0_80 = arith.constant 0 : index
    %143 = vector.load %arg11[%c1_78, %c0_79, %c0_80] : memref<2x1x128xf32, #tpu.memory_space<vmem>>, vector<1x1x128xf32>
    %144 = vector.shape_cast %143 : vector<1x1x128xf32> to vector<1x128xf32>
    %c1_81 = arith.constant 1 : index
    %c0_82 = arith.constant 0 : index
    %c0_83 = arith.constant 0 : index
    %145 = vector.load %arg12[%c1_81, %c0_82, %c0_83] : memref<2x1x128xf32, #tpu.memory_space<vmem>>, vector<1x1x128xf32>
    %146 = vector.shape_cast %145 : vector<1x1x128xf32> to vector<1x128xf32>
    %c1_84 = arith.constant 1 : index
    %c0_85 = arith.constant 0 : index
    %c0_86 = arith.constant 0 : index
    %147 = vector.load %arg13[%c1_84, %c0_85, %c0_86] : memref<2x1x128xf32, #tpu.memory_space<vmem>>, vector<1x1x128xf32>
    %148 = vector.shape_cast %147 : vector<1x1x128xf32> to vector<1x128xf32>
    %c1_87 = arith.constant 1 : index
    %c0_88 = arith.constant 0 : index
    %c0_89 = arith.constant 0 : index
    %149 = vector.load %arg14[%c1_87, %c0_88, %c0_89] : memref<2x1x128xf32, #tpu.memory_space<vmem>>, vector<1x1x128xf32>
    %150 = vector.shape_cast %149 : vector<1x1x128xf32> to vector<1x128xf32>
    %cst_90 = arith.constant dense<0.000000e+00> : vector<16x384xf32>
    %151 = tpu.matmul %126, %128, %cst_90 {dimension_numbers = #tpu.dot_dimension_numbers<[1], [0], [0], [1], [0, 0, 1, 1], [], []>} : vector<16x128xf32>, vector<128x384xf32>, vector<16x384xf32> -> vector<16x384xf32>
    %152 = vector.broadcast %130 : vector<1x384xf32> to vector<16x384xf32>
    %153 = arith.addf %151, %152 : vector<16x384xf32>
    %154 = vector.extract_strided_slice %153 {offsets = [0, 0], sizes = [16, 128], strides = [1, 1]} : vector<16x384xf32> to vector<16x128xf32>
    %155 = vector.extract_strided_slice %153 {offsets = [0, 128], sizes = [16, 128], strides = [1, 1]} : vector<16x384xf32> to vector<16x128xf32>
    %156 = vector.extract_strided_slice %153 {offsets = [0, 256], sizes = [16, 128], strides = [1, 1]} : vector<16x384xf32> to vector<16x128xf32>
    %157 = vector.extract_strided_slice %154 {offsets = [0, 0], sizes = [8, 128], strides = [1, 1]} : vector<16x128xf32> to vector<8x128xf32>
    %158 = vector.extract_strided_slice %154 {offsets = [8, 0], sizes = [8, 128], strides = [1, 1]} : vector<16x128xf32> to vector<8x128xf32>
    %159 = vector.extract_strided_slice %155 {offsets = [0, 0], sizes = [8, 128], strides = [1, 1]} : vector<16x128xf32> to vector<8x128xf32>
    %160 = vector.extract_strided_slice %155 {offsets = [8, 0], sizes = [8, 128], strides = [1, 1]} : vector<16x128xf32> to vector<8x128xf32>
    %161 = vector.extract_strided_slice %156 {offsets = [0, 0], sizes = [8, 128], strides = [1, 1]} : vector<16x128xf32> to vector<8x128xf32>
    %162 = vector.extract_strided_slice %156 {offsets = [8, 0], sizes = [8, 128], strides = [1, 1]} : vector<16x128xf32> to vector<8x128xf32>
    %163 = arith.mulf %157, %159 : vector<8x128xf32>
    %164 = arith.mulf %157, %160 : vector<8x128xf32>
    %165 = arith.mulf %158, %159 : vector<8x128xf32>
    %166 = arith.mulf %158, %160 : vector<8x128xf32>
    %167 = tpu.concatenate %163, %164, %165, %166 in 0 : vector<8x128xf32>, vector<8x128xf32>, vector<8x128xf32>, vector<8x128xf32> -> vector<32x128xf32>
    %cst_91 = arith.constant dense<0.000000e+00> : vector<32x128xf32>
    %168 = tpu.matmul %167, %2, %cst_91 {dimension_numbers = #tpu.dot_dimension_numbers<[1], [0], [0], [1], [0, 0, 1, 1], [], []>} : vector<32x128xf32>, vector<128x128xf32>, vector<32x128xf32> -> vector<32x128xf32>
    %169 = vector.extract_strided_slice %168 {offsets = [0, 0], sizes = [8, 128], strides = [1, 1]} : vector<32x128xf32> to vector<8x128xf32>
    %170 = vector.extract_strided_slice %168 {offsets = [8, 0], sizes = [8, 128], strides = [1, 1]} : vector<32x128xf32> to vector<8x128xf32>
    %171 = arith.maximumf %169, %170 : vector<8x128xf32>
    %172 = arith.subf %169, %171 : vector<8x128xf32>
    %173 = math.exp %172 : vector<8x128xf32>
    %174 = arith.subf %170, %171 : vector<8x128xf32>
    %175 = math.exp %174 : vector<8x128xf32>
    %176 = arith.addf %173, %175 : vector<8x128xf32>
    %177 = tpu.reciprocal %176 {approx = true} : vector<8x128xf32> -> vector<8x128xf32>
    %178 = arith.mulf %173, %177 : vector<8x128xf32>
    %179 = arith.mulf %178, %161 : vector<8x128xf32>
    %180 = arith.mulf %175, %177 : vector<8x128xf32>
    %181 = arith.mulf %180, %162 : vector<8x128xf32>
    %182 = arith.addf %179, %181 : vector<8x128xf32>
    %183 = vector.extract_strided_slice %168 {offsets = [16, 0], sizes = [8, 128], strides = [1, 1]} : vector<32x128xf32> to vector<8x128xf32>
    %184 = vector.extract_strided_slice %168 {offsets = [24, 0], sizes = [8, 128], strides = [1, 1]} : vector<32x128xf32> to vector<8x128xf32>
    %185 = arith.maximumf %183, %184 : vector<8x128xf32>
    %186 = arith.subf %183, %185 : vector<8x128xf32>
    %187 = math.exp %186 : vector<8x128xf32>
    %188 = arith.subf %184, %185 : vector<8x128xf32>
    %189 = math.exp %188 : vector<8x128xf32>
    %190 = arith.addf %187, %189 : vector<8x128xf32>
    %191 = tpu.reciprocal %190 {approx = true} : vector<8x128xf32> -> vector<8x128xf32>
    %192 = arith.mulf %187, %191 : vector<8x128xf32>
    %193 = arith.mulf %192, %161 : vector<8x128xf32>
    %194 = arith.mulf %189, %191 : vector<8x128xf32>
    %195 = arith.mulf %194, %162 : vector<8x128xf32>
    %196 = arith.addf %193, %195 : vector<8x128xf32>
    %197 = tpu.concatenate %182, %196 in 0 : vector<8x128xf32>, vector<8x128xf32> -> vector<16x128xf32>
    %cst_92 = arith.constant dense<0.000000e+00> : vector<16x128xf32>
    %198 = tpu.matmul %197, %132, %cst_92 {dimension_numbers = #tpu.dot_dimension_numbers<[1], [0], [0], [1], [0, 0, 1, 1], [], []>} : vector<16x128xf32>, vector<128x128xf32>, vector<16x128xf32> -> vector<16x128xf32>
    %199 = vector.broadcast %134 : vector<1x128xf32> to vector<16x128xf32>
    %200 = arith.addf %198, %199 : vector<16x128xf32>
    %201 = arith.addf %126, %200 : vector<16x128xf32>
    %cst_93 = arith.constant dense<0.000000e+00> : vector<16xf32>
    %202 = vector.multi_reduction <add>, %201, %cst_93 [1] : vector<16x128xf32> to vector<16xf32>
    %203 = vector.shape_cast %202 : vector<16xf32> to vector<16x1xf32>
    %cst_94 = arith.constant 1.280000e+02 : f32
    %204 = vector.broadcast %cst_94 : f32 to vector<16x1xf32>
    %205 = arith.divf %203, %204 : vector<16x1xf32>
    %206 = vector.broadcast %205 : vector<16x1xf32> to vector<16x128xf32>
    %207 = arith.subf %201, %206 : vector<16x128xf32>
    %208 = arith.mulf %207, %207 : vector<16x128xf32>
    %cst_95 = arith.constant dense<0.000000e+00> : vector<16xf32>
    %209 = vector.multi_reduction <add>, %208, %cst_95 [1] : vector<16x128xf32> to vector<16xf32>
    %210 = vector.shape_cast %209 : vector<16xf32> to vector<16x1xf32>
    %cst_96 = arith.constant 1.280000e+02 : f32
    %211 = vector.broadcast %cst_96 : f32 to vector<16x1xf32>
    %212 = arith.divf %210, %211 : vector<16x1xf32>
    %cst_97 = arith.constant 9.99999974E-6 : f32
    %213 = vector.broadcast %cst_97 : f32 to vector<16x1xf32>
    %214 = arith.addf %212, %213 : vector<16x1xf32>
    %215 = math.rsqrt %214 : vector<16x1xf32>
    %216 = vector.broadcast %215 : vector<16x1xf32> to vector<16x128xf32>
    %217 = arith.mulf %207, %216 : vector<16x128xf32>
    %218 = vector.broadcast %144 : vector<1x128xf32> to vector<16x128xf32>
    %219 = arith.mulf %217, %218 : vector<16x128xf32>
    %220 = vector.broadcast %146 : vector<1x128xf32> to vector<16x128xf32>
    %221 = arith.addf %219, %220 : vector<16x128xf32>
    %cst_98 = arith.constant dense<0.000000e+00> : vector<16x256xf32>
    %222 = tpu.matmul %221, %136, %cst_98 {dimension_numbers = #tpu.dot_dimension_numbers<[1], [0], [0], [1], [0, 0, 1, 1], [], []>} : vector<16x128xf32>, vector<128x256xf32>, vector<16x256xf32> -> vector<16x256xf32>
    %223 = vector.broadcast %138 : vector<1x256xf32> to vector<16x256xf32>
    %224 = arith.addf %222, %223 : vector<16x256xf32>
    %cst_99 = arith.constant 0.000000e+00 : f32
    %225 = vector.broadcast %cst_99 : f32 to vector<16x256xf32>
    %226 = arith.maximumf %224, %225 : vector<16x256xf32>
    %cst_100 = arith.constant dense<0.000000e+00> : vector<16x128xf32>
    %227 = tpu.matmul %226, %140, %cst_100 {dimension_numbers = #tpu.dot_dimension_numbers<[1], [0], [0], [1], [0, 0, 1, 1], [], []>} : vector<16x256xf32>, vector<256x128xf32>, vector<16x128xf32> -> vector<16x128xf32>
    %228 = vector.broadcast %142 : vector<1x128xf32> to vector<16x128xf32>
    %229 = arith.addf %227, %228 : vector<16x128xf32>
    %230 = arith.addf %221, %229 : vector<16x128xf32>
    %cst_101 = arith.constant dense<0.000000e+00> : vector<16xf32>
    %231 = vector.multi_reduction <add>, %230, %cst_101 [1] : vector<16x128xf32> to vector<16xf32>
    %232 = vector.shape_cast %231 : vector<16xf32> to vector<16x1xf32>
    %cst_102 = arith.constant 1.280000e+02 : f32
    %233 = vector.broadcast %cst_102 : f32 to vector<16x1xf32>
    %234 = arith.divf %232, %233 : vector<16x1xf32>
    %235 = vector.broadcast %234 : vector<16x1xf32> to vector<16x128xf32>
    %236 = arith.subf %230, %235 : vector<16x128xf32>
    %237 = arith.mulf %236, %236 : vector<16x128xf32>
    %cst_103 = arith.constant dense<0.000000e+00> : vector<16xf32>
    %238 = vector.multi_reduction <add>, %237, %cst_103 [1] : vector<16x128xf32> to vector<16xf32>
    %239 = vector.shape_cast %238 : vector<16xf32> to vector<16x1xf32>
    %cst_104 = arith.constant 1.280000e+02 : f32
    %240 = vector.broadcast %cst_104 : f32 to vector<16x1xf32>
    %241 = arith.divf %239, %240 : vector<16x1xf32>
    %cst_105 = arith.constant 9.99999974E-6 : f32
    %242 = vector.broadcast %cst_105 : f32 to vector<16x1xf32>
    %243 = arith.addf %241, %242 : vector<16x1xf32>
    %244 = math.rsqrt %243 : vector<16x1xf32>
    %245 = vector.broadcast %244 : vector<16x1xf32> to vector<16x128xf32>
    %246 = arith.mulf %236, %245 : vector<16x128xf32>
    %247 = vector.broadcast %148 : vector<1x128xf32> to vector<16x128xf32>
    %248 = arith.mulf %246, %247 : vector<16x128xf32>
    %249 = vector.broadcast %150 : vector<1x128xf32> to vector<16x128xf32>
    %250 = arith.addf %248, %249 : vector<16x128xf32>
    %251 = vector.extract_strided_slice %250 {offsets = [0, 0], sizes = [8, 128], strides = [1, 1]} : vector<16x128xf32> to vector<8x128xf32>
    %cst_106 = arith.constant dense<0.000000e+00> : vector<128xf32>
    %252 = vector.multi_reduction <add>, %251, %cst_106 [0] : vector<8x128xf32> to vector<128xf32>
    %253 = vector.shape_cast %252 : vector<128xf32> to vector<1x128xf32>
    %cst_107 = arith.constant 8.000000e+00 : f32
    %254 = vector.broadcast %cst_107 : f32 to vector<1x128xf32>
    %255 = arith.divf %253, %254 : vector<1x128xf32>
    %256 = vector.extract_strided_slice %250 {offsets = [8, 0], sizes = [8, 128], strides = [1, 1]} : vector<16x128xf32> to vector<8x128xf32>
    %cst_108 = arith.constant dense<0.000000e+00> : vector<128xf32>
    %257 = vector.multi_reduction <add>, %256, %cst_108 [0] : vector<8x128xf32> to vector<128xf32>
    %258 = vector.shape_cast %257 : vector<128xf32> to vector<1x128xf32>
    %cst_109 = arith.constant 8.000000e+00 : f32
    %259 = vector.broadcast %cst_109 : f32 to vector<1x128xf32>
    %260 = arith.divf %258, %259 : vector<1x128xf32>
    %261 = tpu.concatenate %255, %260 in 0 : vector<1x128xf32>, vector<1x128xf32> -> vector<2x128xf32>
    %c0_110 = arith.constant 0 : index
    %c0_111 = arith.constant 0 : index
    %c0_112 = arith.constant 0 : index
    %262 = vector.load %arg15[%c0_110, %c0_111, %c0_112] : memref<1x2x128xf32, #tpu.memory_space<vmem>>, vector<1x2x128xf32>
    %263 = vector.shape_cast %262 : vector<1x2x128xf32> to vector<2x128xf32>
    %264 = vector.shape_cast %261 : vector<2x128xf32> to vector<1x2x128xf32>
    tpu.vector_store %arg15[%c0_110, %c0_111, %c0_112], %264 {strides = array<i32>} : memref<1x2x128xf32, #tpu.memory_space<vmem>>, vector<1x2x128xf32>,
    return
  }
  func.func @transform_0(%arg0: i32) -> (i32, i32, i32) {
    %c0_i32 = arith.constant 0 : i32
    %c0_i32_0 = arith.constant 0 : i32
    %c0_i32_1 = arith.constant 0 : i32
    return %arg0, %c0_i32, %c0_i32_0 : i32, i32, i32
  }
  func.func @transform_1(%arg0: i32) -> (i32, i32) {
    %c0_i32 = arith.constant 0 : i32
    %c0_i32_0 = arith.constant 0 : i32
    %c0_i32_1 = arith.constant 0 : i32
    return %c0_i32, %c0_i32_0 : i32, i32
  }
  func.func @transform_2(%arg0: i32) -> (i32, i32, i32) {
    %c0_i32 = arith.constant 0 : i32
    %c0_i32_0 = arith.constant 0 : i32
    %c0_i32_1 = arith.constant 0 : i32
    %c0_i32_2 = arith.constant 0 : i32
    return %c0_i32, %c0_i32_0, %c0_i32_1 : i32, i32, i32
  }
  func.func @transform_3(%arg0: i32) -> (i32, i32, i32) {
    %c0_i32 = arith.constant 0 : i32
    %c0_i32_0 = arith.constant 0 : i32
    %c0_i32_1 = arith.constant 0 : i32
    %c0_i32_2 = arith.constant 0 : i32
    return %c0_i32, %c0_i32_0, %c0_i32_1 : i32, i32, i32
  }
  func.func @transform_4(%arg0: i32) -> (i32, i32, i32) {
    %c0_i32 = arith.constant 0 : i32
    %c0_i32_0 = arith.constant 0 : i32
    %c0_i32_1 = arith.constant 0 : i32
    %c0_i32_2 = arith.constant 0 : i32
    return %c0_i32, %c0_i32_0, %c0_i32_1 : i32, i32, i32
  }
  func.func @transform_5(%arg0: i32) -> (i32, i32, i32) {
    %c0_i32 = arith.constant 0 : i32
    %c0_i32_0 = arith.constant 0 : i32
    %c0_i32_1 = arith.constant 0 : i32
    %c0_i32_2 = arith.constant 0 : i32
    return %c0_i32, %c0_i32_0, %c0_i32_1 : i32, i32, i32
  }
  func.func @transform_6(%arg0: i32) -> (i32, i32, i32) {
    %c0_i32 = arith.constant 0 : i32
    %c0_i32_0 = arith.constant 0 : i32
    %c0_i32_1 = arith.constant 0 : i32
    %c0_i32_2 = arith.constant 0 : i32
    return %c0_i32, %c0_i32_0, %c0_i32_1 : i32, i32, i32
  }
  func.func @transform_7(%arg0: i32) -> (i32, i32, i32) {
    %c0_i32 = arith.constant 0 : i32
    %c0_i32_0 = arith.constant 0 : i32
    %c0_i32_1 = arith.constant 0 : i32
    %c0_i32_2 = arith.constant 0 : i32
    return %c0_i32, %c0_i32_0, %c0_i32_1 : i32, i32, i32
  }
  func.func @transform_8(%arg0: i32) -> (i32, i32, i32) {
    %c0_i32 = arith.constant 0 : i32
    %c0_i32_0 = arith.constant 0 : i32
    %c0_i32_1 = arith.constant 0 : i32
    %c0_i32_2 = arith.constant 0 : i32
    return %c0_i32, %c0_i32_0, %c0_i32_1 : i32, i32, i32
  }
  func.func @transform_9(%arg0: i32) -> (i32, i32, i32) {
    %c0_i32 = arith.constant 0 : i32
    %c0_i32_0 = arith.constant 0 : i32
    %c0_i32_1 = arith.constant 0 : i32
    %c0_i32_2 = arith.constant 0 : i32
    return %c0_i32, %c0_i32_0, %c0_i32_1 : i32, i32, i32
  }
  func.func @transform_10(%arg0: i32) -> (i32, i32, i32) {
    %c0_i32 = arith.constant 0 : i32
    %c0_i32_0 = arith.constant 0 : i32
    %c0_i32_1 = arith.constant 0 : i32
    %c0_i32_2 = arith.constant 0 : i32
    return %c0_i32, %c0_i32_0, %c0_i32_1 : i32, i32, i32
  }
  func.func @transform_11(%arg0: i32) -> (i32, i32, i32) {
    %c0_i32 = arith.constant 0 : i32
    %c0_i32_0 = arith.constant 0 : i32
    %c0_i32_1 = arith.constant 0 : i32
    %c0_i32_2 = arith.constant 0 : i32
    return %c0_i32, %c0_i32_0, %c0_i32_1 : i32, i32, i32
  }
  func.func @transform_12(%arg0: i32) -> (i32, i32, i32) {
    %c0_i32 = arith.constant 0 : i32
    %c0_i32_0 = arith.constant 0 : i32
    %c0_i32_1 = arith.constant 0 : i32
    %c0_i32_2 = arith.constant 0 : i32
    return %c0_i32, %c0_i32_0, %c0_i32_1 : i32, i32, i32
  }
  func.func @transform_13(%arg0: i32) -> (i32, i32, i32) {
    %c0_i32 = arith.constant 0 : i32
    %c0_i32_0 = arith.constant 0 : i32
    %c0_i32_1 = arith.constant 0 : i32
    %c0_i32_2 = arith.constant 0 : i32
    return %c0_i32, %c0_i32_0, %c0_i32_1 : i32, i32, i32
  }
  func.func @transform_14(%arg0: i32) -> (i32, i32, i32) {
    %c0_i32 = arith.constant 0 : i32
    %c0_i32_0 = arith.constant 0 : i32
    %c0_i32_1 = arith.constant 0 : i32
    return %arg0, %c0_i32, %c0_i32_0 : i32, i32, i32
  }
}

</mosaic_0001>

<llo_original>
// kernel: sentence_similarity.3
$region0: #{sentence_similarity.3}
  #allocation0 [shape = 'u32[]', space=smem, size = 0x4, offset = 0x4, fixed_abs, tag = 'smem constant byte address 0x4 - core index']
  #allocation1 [shape = 'u32[144,128]{1,0:T(1,128)}', space=vmem, size = 0x12000, scoped, tag = 'internal scratch']
  %s0 = inlined_call_operand.vmem [shape: f32[2,2,128], index: 0, kind: input, shape index: {}]
  %s1 = inlined_call_operand.vmem [shape: f32[2,1], index: 1, kind: output, shape index: {}]
  %s2 = sld [smem:[#allocation0]]
  $region14: #{sentence_similarity.3} parent=0
    _
  %s4 = ssub.s32 1, %s2
  %s5 = scalar_select 0, %s4, %s2
  // Predicated region
  $region2: #{sentence_similarity.3} parent=0 // pred_check
    _
  $region3: #{sentence_similarity.3} parent=0 // pred_check_branch
    %7 = sbr.rel (0) target = $region5
  $region4: #{sentence_similarity.3} parent=0 // pred_region
    _
  $region5: #{sentence_similarity.3} parent=0 // pred_fallthru
    _
  %v8 = vld [vmem:[%s0] sm:$0x3]
  %s9 = scalar_lea.vmem %s0, 2
  %v10 = vld [vmem:[%s9] sm:$0x3]
  %v11 = vmul.f32 %v8, %v10
  %vm12 = vcmask 1041408
  %v13 = vsel %vm12, %v11, 0.0
  %14 = vadd.xlane.f32.xlu0 %v13
  %v15 = vpop.xlane.xlu0 %14
  %v16 = vmul.f32 %v8, %v8
  %v17 = vsel %vm12, %v16, 0.0
  %18 = vadd.xlane.f32.xlu0 %v17
  %v19 = vpop.xlane.xlu0 %18
  %v20 = vrsqrt.pop %v19
  %v21 = vmul.f32 %v19, %v20
  %vm22 = vcmp.eq.f32.partialorder %v19, inf
  %v23 = vsel %vm22, %v19, %v21
  %vm24 = vcmp.eq.f32.partialorder %v19, 0.0
  %v25 = vand.u32 %v19, 2147483648
  %v26 = vsel %vm24, %v25, %v23
  %v27 = vmax.f32 %v26, 1e-08
  %v28 = vmul.f32 %v10, %v10
  %v29 = vsel %vm12, %v28, 0.0
  %30 = vadd.xlane.f32.xlu0 %v29
  %v31 = vpop.xlane.xlu0 %30
  %v32 = vrsqrt.pop %v31
  %v33 = vmul.f32 %v31, %v32
  %vm34 = vcmp.eq.f32.partialorder %v31, inf
  %v35 = vsel %vm34, %v31, %v33
  %vm36 = vcmp.eq.f32.partialorder %v31, 0.0
  %v37 = vand.u32 %v31, 2147483648
  %v38 = vsel %vm36, %v37, %v35
  %v39 = vmax.f32 %v38, 1e-08
  %v40 = vrcp.pop %v27
  %v41 = vmul.f32 %v15, %v40
  %v42 = vrcp.pop %v39
  %v43 = vmul.f32 %v41, %v42
  %vm44 = vcmask 1024
  %45 = vst.msk [vmem:[%s1] sm:$0x3] %vm44, %v43
  // Predicated region
  $region6: #{sentence_similarity.3} parent=0 // pred_check
    _
  $region7: #{sentence_similarity.3} parent=0 // pred_check_branch
    %47 = sbr.rel (0) target = $region9
  $region8: #{sentence_similarity.3} parent=0 // pred_region
    _
  $region9: #{sentence_similarity.3} parent=0 // pred_fallthru
    _
  // Predicated region
  $region10: #{sentence_similarity.3} parent=0 // pred_check
    _
  $region11: #{sentence_similarity.3} parent=0 // pred_check_branch
    %49 = sbr.rel (0) target = $region13
  $region12: #{sentence_similarity.3} parent=0 // pred_region
    _
  $region13: #{sentence_similarity.3} parent=0 // pred_fallthru
    _

// kernel: sentence_similarity.2
$region0: #{sentence_similarity.2}
  #allocation0 [shape = 'u32[]', space=smem, size = 0x4, offset = 0x4, fixed_abs, tag = 'smem constant byte address 0x4 - core index']
  #allocation1 [shape = 'u32[144,128]{1,0:T(1,128)}', space=vmem, size = 0x12000, scoped, tag = 'internal scratch']
  %s0 = inlined_call_operand.vmem [shape: f32[2,16,128], index: 0, kind: input, shape index: {}]
  %s1 = inlined_call_operand.hbm [shape: f32[128,128], index: 1, kind: input, shape index: {}]
  %s2 = inlined_call_operand.hbm [shape: f32[2,128,384], index: 2, kind: input, shape index: {}]
  %s3 = inlined_call_operand.vmem [shape: f32[2,1,384], index: 3, kind: input, shape index: {}]
  %s4 = inlined_call_operand.hbm [shape: f32[2,128,128], index: 4, kind: input, shape index: {}]
  %s5 = inlined_call_operand.vmem [shape: f32[2,1,128], index: 5, kind: input, shape index: {}]
  %s6 = inlined_call_operand.hbm [shape: f32[2,128,256], index: 6, kind: input, shape index: {}]
  %s7 = inlined_call_operand.vmem [shape: f32[2,1,256], index: 7, kind: input, shape index: {}]
  %s8 = inlined_call_operand.hbm [shape: f32[2,256,128], index: 8, kind: input, shape index: {}]
  %s9 = inlined_call_operand.vmem [shape: f32[2,1,128], index: 9, kind: input, shape index: {}]
  %s10 = inlined_call_operand.vmem [shape: f32[2,1,128], index: 10, kind: input, shape index: {}]
  %s11 = inlined_call_operand.vmem [shape: f32[2,1,128], index: 11, kind: input, shape index: {}]
  %s12 = inlined_call_operand.vmem [shape: f32[2,1,128], index: 12, kind: input, shape index: {}]
  %s13 = inlined_call_operand.vmem [shape: f32[2,1,128], index: 13, kind: input, shape index: {}]
  %s14 = inlined_call_operand.vmem [shape: f32[2,2,128], index: 14, kind: output, shape index: {}]
  %s15 = sld [smem:[#allocation0]]
  $region109: #{sentence_similarity.2} parent=0
    _
  %s17 = ssub.s32 1, %s15
  %s18 = scalar_select 0, %s17, %s15
  $region1: #{sentence_similarity.2} parent=0
    #allocation2 [shape = 'u8[65536]{0}', space=vmem, size = 0x10000, scoped, tag = 'input window, operand 1, single buffered']
    #allocation3 [shape = 's32[2]{0}', space=sflag, size = 0x8, scoped, tag = 'scoped memory for sentence_similarity.2']
    #allocation4 [shape = 'u8[393216]{0}', space=vmem, size = 0x60000, scoped, tag = 'input window, operand 2, single buffered']
    #allocation5 [shape = 's32[1]{0}', space=sflag, size = 0x4, scoped, tag = 'scoped memory for sentence_similarity.2']
    #allocation6 [shape = 'u8[131072]{0}', space=vmem, size = 0x20000, scoped, tag = 'input window, operand 4, single buffered']
    #allocation7 [shape = 'u8[262144]{0}', space=vmem, size = 0x40000, scoped, tag = 'input window, operand 6, single buffered']
    #allocation8 [shape = 's32[1]{0}', space=sflag, size = 0x4, scoped, tag = 'scoped memory for sentence_similarity.2']
    #allocation9 [shape = 'u8[262144]{0}', space=vmem, size = 0x40000, scoped, tag = 'input window, operand 8, single buffered']
    %19 = vsyncpa [#allocation3], 0
    %20 = vsyncpa [#allocation5], 0
    %21 = vsyncpa [#allocation8], 0
    loop: start=0, step=1, limit=4
    $region2: #{sentence_similarity.2} parent=1 // loop_pre_header
      _
    $region3: #{sentence_similarity.2} parent=1 // loop_header
      %s23 = sphi 0, %s27
      %p24 = scmp.ge.s32.totalorder %s23, 4
      %s33 = sphi 0, %s35
      %s36 = sphi 0, %s33
      %s37 = sphi 0, %s36
      %s53 = sphi 0, %s37
      %s57 = sphi 0, %s57
      %s59 = sphi 0, %s57
      %s60 = sphi 0, %s59
      %s74 = sphi 0, %s60
      %s78 = sphi 0, %s78
      %s80 = sphi 0, %s78
      %s81 = sphi 0, %s80
      %s95 = sphi 0, %s81
      %s99 = sphi 0, %s99
      %s101 = sphi 0, %s99
      %s102 = sphi 0, %s101
      %s116 = sphi 0, %s102
      %s120 = sphi 0, %s120
      %s122 = sphi 0, %s120
      %s123 = sphi 0, %s122
      %s137 = sphi 0, %s123
      %s141 = sphi 0, %s141
      %s143 = sphi 0, %s141
      %s144 = sphi 0, %s143
      %s158 = sphi 0, %s144
      %s162 = sphi 0, %s162
      %s164 = sphi 0, %s162
      %s165 = sphi 0, %s164
      %s179 = sphi 0, %s165
      %s183 = sphi 0, %s183
      %s185 = sphi 0, %s183
      %s186 = sphi 0, %s185
      %s200 = sphi 0, %s186
      %s204 = sphi 0, %s204
      %s206 = sphi 0, %s204
      %s207 = sphi 0, %s206
      %s221 = sphi 0, %s207
      %s225 = sphi 0, %s225
      %s227 = sphi 0, %s225
      %s228 = sphi 0, %s227
      %s242 = sphi 0, %s228
      %s246 = sphi 0, %s246
      %s248 = sphi 0, %s246
      %s249 = sphi 0, %s248
      %s263 = sphi 0, %s249
      %s267 = sphi 0, %s267
      %s269 = sphi 0, %s267
      %s270 = sphi 0, %s269
      %s284 = sphi 0, %s270
      %s288 = sphi 0, %s288
      %s290 = sphi 0, %s288
      %s291 = sphi 0, %s290
      %s305 = sphi 0, %s291
      %s309 = sphi 0, %s309
      %s311 = sphi 0, %s309
      %s312 = sphi 0, %s311
      %s326 = sphi 0, %s312
      %s332 = sphi 0, %s334
      %s335 = sphi 0, %s332
      %s336 = sphi 0, %s335
      %s352 = sphi 0, %s336
    $region4: #{sentence_similarity.2} parent=1 // loop_header_branch
      %26 = sbr.rel (%p24) target = $region8
    $region5: #{sentence_similarity.2} parent=1 // loop_body
      %s28 = ssub.s32 %s23, 1
      %s29 = ssub.s32 %s23, 2
      %s30 = sadd.s32 %s23, 1
      %s31 = ssub.s32 %s23, %s30
      %p32 = scmp.eq.s32.totalorder %s31, 0
      %s34 = sadd.s32 %s33, 1
      %s35 = scalar_select %p32, %s33, %s34
      %p38 = pneg %p32
      %p39 = scmp.eq.s32.totalorder %s23, 1
      %p40 = por %p38, %p39
      %p41 = scmp.ne.s32.totalorder %s33, %s36
      %p42 = scmp.eq.s32.totalorder %s23, 0
      %p43 = por %p41, %p42
      %p44 = scmp.ne.s32.totalorder %s33, %s36
      %p45 = scmp.eq.s32.totalorder %s28, 1
      %p46 = por %p44, %p45
      %p47 = scmp.ne.s32.totalorder %s36, %s37
      %p48 = scmp.eq.s32.totalorder %s28, 0
      %p49 = por %p47, %p48
      %p50 = scmp.ne.s32.totalorder %s36, %s37
      %p51 = scmp.eq.s32.totalorder %s29, 1
      %p52 = por %p50, %p51
      %p54 = scmp.ne.s32.totalorder %s37, %s53
      %p55 = scmp.eq.s32.totalorder %s29, 0
      %p56 = por %p54, %p55
      %s58 = sadd.s32 %s57, 1
      %p61 = scmp.eq.s32.totalorder %s23, 1
      %p62 = scmp.ne.s32.totalorder %s57, %s59
      %p63 = scmp.eq.s32.totalorder %s23, 0
      %p64 = por %p62, %p63
      %p65 = scmp.ne.s32.totalorder %s57, %s59
      %p66 = scmp.eq.s32.totalorder %s28, 1
      %p67 = por %p65, %p66
      %p68 = scmp.ne.s32.totalorder %s59, %s60
      %p69 = scmp.eq.s32.totalorder %s28, 0
      %p70 = por %p68, %p69
      %p71 = scmp.ne.s32.totalorder %s59, %s60
      %p72 = scmp.eq.s32.totalorder %s29, 1
      %p73 = por %p71, %p72
      %p75 = scmp.ne.s32.totalorder %s60, %s74
      %p76 = scmp.eq.s32.totalorder %s29, 0
      %p77 = por %p75, %p76
      %s79 = sadd.s32 %s78, 1
      %p82 = scmp.eq.s32.totalorder %s23, 1
      %p83 = scmp.ne.s32.totalorder %s78, %s80
      %p84 = scmp.eq.s32.totalorder %s23, 0
      %p85 = por %p83, %p84
      %p86 = scmp.ne.s32.totalorder %s78, %s80
      %p87 = scmp.eq.s32.totalorder %s28, 1
      %p88 = por %p86, %p87
      %p89 = scmp.ne.s32.totalorder %s80, %s81
      %p90 = scmp.eq.s32.totalorder %s28, 0
      %p91 = por %p89, %p90
      %p92 = scmp.ne.s32.totalorder %s80, %s81
      %p93 = scmp.eq.s32.totalorder %s29, 1
      %p94 = por %p92, %p93
      %p96 = scmp.ne.s32.totalorder %s81, %s95
      %p97 = scmp.eq.s32.totalorder %s29, 0
      %p98 = por %p96, %p97
      %s100 = sadd.s32 %s99, 1
      %p103 = scmp.eq.s32.totalorder %s23, 1
      %p104 = scmp.ne.s32.totalorder %s99, %s101
      %p105 = scmp.eq.s32.totalorder %s23, 0
      %p106 = por %p104, %p105
      %p107 = scmp.ne.s32.totalorder %s99, %s101
      %p108 = scmp.eq.s32.totalorder %s28, 1
      %p109 = por %p107, %p108
      %p110 = scmp.ne.s32.totalorder %s101, %s102
      %p111 = scmp.eq.s32.totalorder %s28, 0
      %p112 = por %p110, %p111
      %p113 = scmp.ne.s32.totalorder %s101, %s102
      %p114 = scmp.eq.s32.totalorder %s29, 1
      %p115 = por %p113, %p114
      %p117 = scmp.ne.s32.totalorder %s102, %s116
      %p118 = scmp.eq.s32.totalorder %s29, 0
      %p119 = por %p117, %p118
      %s121 = sadd.s32 %s120, 1
      %p124 = scmp.eq.s32.totalorder %s23, 1
      %p125 = scmp.ne.s32.totalorder %s120, %s122
      %p126 = scmp.eq.s32.totalorder %s23, 0
      %p127 = por %p125, %p126
      %p128 = scmp.ne.s32.totalorder %s120, %s122
      %p129 = scmp.eq.s32.totalorder %s28, 1
      %p130 = por %p128, %p129
      %p131 = scmp.ne.s32.totalorder %s122, %s123
      %p132 = scmp.eq.s32.totalorder %s28, 0
      %p133 = por %p131, %p132
      %p134 = scmp.ne.s32.totalorder %s122, %s123
      %p135 = scmp.eq.s32.totalorder %s29, 1
      %p136 = por %p134, %p135
      %p138 = scmp.ne.s32.totalorder %s123, %s137
      %p139 = scmp.eq.s32.totalorder %s29, 0
      %p140 = por %p138, %p139
      %s142 = sadd.s32 %s141, 1
      %p145 = scmp.eq.s32.totalorder %s23, 1
      %p146 = scmp.ne.s32.totalorder %s141, %s143
      %p147 = scmp.eq.s32.totalorder %s23, 0
      %p148 = por %p146, %p147
      %p149 = scmp.ne.s32.totalorder %s141, %s143
      %p150 = scmp.eq.s32.totalorder %s28, 1
      %p151 = por %p149, %p150
      %p152 = scmp.ne.s32.totalorder %s143, %s144
      %p153 = scmp.eq.s32.totalorder %s28, 0
      %p154 = por %p152, %p153
      %p155 = scmp.ne.s32.totalorder %s143, %s144
      %p156 = scmp.eq.s32.totalorder %s29, 1
      %p157 = por %p155, %p156
      %p159 = scmp.ne.s32.totalorder %s144, %s158
      %p160 = scmp.eq.s32.totalorder %s29, 0
      %p161 = por %p159, %p160
      %s163 = sadd.s32 %s162, 1
      %p166 = scmp.eq.s32.totalorder %s23, 1
      %p167 = scmp.ne.s32.totalorder %s162, %s164
      %p168 = scmp.eq.s32.totalorder %s23, 0
      %p169 = por %p167, %p168
      %p170 = scmp.ne.s32.totalorder %s162, %s164
      %p171 = scmp.eq.s32.totalorder %s28, 1
      %p172 = por %p170, %p171
      %p173 = scmp.ne.s32.totalorder %s164, %s165
      %p174 = scmp.eq.s32.totalorder %s28, 0
      %p175 = por %p173, %p174
      %p176 = scmp.ne.s32.totalorder %s164, %s165
      %p177 = scmp.eq.s32.totalorder %s29, 1
      %p178 = por %p176, %p177
      %p180 = scmp.ne.s32.totalorder %s165, %s179
      %p181 = scmp.eq.s32.totalorder %s29, 0
      %p182 = por %p180, %p181
      %s184 = sadd.s32 %s183, 1
      %p187 = scmp.eq.s32.totalorder %s23, 1
      %p188 = scmp.ne.s32.totalorder %s183, %s185
      %p189 = scmp.eq.s32.totalorder %s23, 0
      %p190 = por %p188, %p189
      %p191 = scmp.ne.s32.totalorder %s183, %s185
      %p192 = scmp.eq.s32.totalorder %s28, 1
      %p193 = por %p191, %p192
      %p194 = scmp.ne.s32.totalorder %s185, %s186
      %p195 = scmp.eq.s32.totalorder %s28, 0
      %p196 = por %p194, %p195
      %p197 = scmp.ne.s32.totalorder %s185, %s186
      %p198 = scmp.eq.s32.totalorder %s29, 1
      %p199 = por %p197, %p198
      %p201 = scmp.ne.s32.totalorder %s186, %s200
      %p202 = scmp.eq.s32.totalorder %s29, 0
      %p203 = por %p201, %p202
      %s205 = sadd.s32 %s204, 1
      %p208 = scmp.eq.s32.totalorder %s23, 1
      %p209 = scmp.ne.s32.totalorder %s204, %s206
      %p210 = scmp.eq.s32.totalorder %s23, 0
      %p211 = por %p209, %p210
      %p212 = scmp.ne.s32.totalorder %s204, %s206
      %p213 = scmp.eq.s32.totalorder %s28, 1
      %p214 = por %p212, %p213
      %p215 = scmp.ne.s32.totalorder %s206, %s207
      %p216 = scmp.eq.s32.totalorder %s28, 0
      %p217 = por %p215, %p216
      %p218 = scmp.ne.s32.totalorder %s206, %s207
      %p219 = scmp.eq.s32.totalorder %s29, 1
      %p220 = por %p218, %p219
      %p222 = scmp.ne.s32.totalorder %s207, %s221
      %p223 = scmp.eq.s32.totalorder %s29, 0
      %p224 = por %p222, %p223
      %s226 = sadd.s32 %s225, 1
      %p229 = scmp.eq.s32.totalorder %s23, 1
      %p230 = scmp.ne.s32.totalorder %s225, %s227
      %p231 = scmp.eq.s32.totalorder %s23, 0
      %p232 = por %p230, %p231
      %p233 = scmp.ne.s32.totalorder %s225, %s227
      %p234 = scmp.eq.s32.totalorder %s28, 1
      %p235 = por %p233, %p234
      %p236 = scmp.ne.s32.totalorder %s227, %s228
      %p237 = scmp.eq.s32.totalorder %s28, 0
      %p238 = por %p236, %p237
      %p239 = scmp.ne.s32.totalorder %s227, %s228
      %p240 = scmp.eq.s32.totalorder %s29, 1
      %p241 = por %p239, %p240
      %p243 = scmp.ne.s32.totalorder %s228, %s242
      %p244 = scmp.eq.s32.totalorder %s29, 0
      %p245 = por %p243, %p244
      %s247 = sadd.s32 %s246, 1
      %p250 = scmp.eq.s32.totalorder %s23, 1
      %p251 = scmp.ne.s32.totalorder %s246, %s248
      %p252 = scmp.eq.s32.totalorder %s23, 0
      %p253 = por %p251, %p252
      %p254 = scmp.ne.s32.totalorder %s246, %s248
      %p255 = scmp.eq.s32.totalorder %s28, 1
      %p256 = por %p254, %p255
      %p257 = scmp.ne.s32.totalorder %s248, %s249
      %p258 = scmp.eq.s32.totalorder %s28, 0
      %p259 = por %p257, %p258
      %p260 = scmp.ne.s32.totalorder %s248, %s249
      %p261 = scmp.eq.s32.totalorder %s29, 1
      %p262 = por %p260, %p261
      %p264 = scmp.ne.s32.totalorder %s249, %s263
      %p265 = scmp.eq.s32.totalorder %s29, 0
      %p266 = por %p264, %p265
      %s268 = sadd.s32 %s267, 1
      %p271 = scmp.eq.s32.totalorder %s23, 1
      %p272 = scmp.ne.s32.totalorder %s267, %s269
      %p273 = scmp.eq.s32.totalorder %s23, 0
      %p274 = por %p272, %p273
      %p275 = scmp.ne.s32.totalorder %s267, %s269
      %p276 = scmp.eq.s32.totalorder %s28, 1
      %p277 = por %p275, %p276
      %p278 = scmp.ne.s32.totalorder %s269, %s270
      %p279 = scmp.eq.s32.totalorder %s28, 0
      %p280 = por %p278, %p279
      %p281 = scmp.ne.s32.totalorder %s269, %s270
      %p282 = scmp.eq.s32.totalorder %s29, 1
      %p283 = por %p281, %p282
      %p285 = scmp.ne.s32.totalorder %s270, %s284
      %p286 = scmp.eq.s32.totalorder %s29, 0
      %p287 = por %p285, %p286
      %s289 = sadd.s32 %s288, 1
      %p292 = scmp.eq.s32.totalorder %s23, 1
      %p293 = scmp.ne.s32.totalorder %s288, %s290
      %p294 = scmp.eq.s32.totalorder %s23, 0
      %p295 = por %p293, %p294
      %p296 = scmp.ne.s32.totalorder %s288, %s290
      %p297 = scmp.eq.s32.totalorder %s28, 1
      %p298 = por %p296, %p297
      %p299 = scmp.ne.s32.totalorder %s290, %s291
      %p300 = scmp.eq.s32.totalorder %s28, 0
      %p301 = por %p299, %p300
      %p302 = scmp.ne.s32.totalorder %s290, %s291
      %p303 = scmp.eq.s32.totalorder %s29, 1
      %p304 = por %p302, %p303
      %p306 = scmp.ne.s32.totalorder %s291, %s305
      %p307 = scmp.eq.s32.totalorder %s29, 0
      %p308 = por %p306, %p307
      %s310 = sadd.s32 %s309, 1
      %p313 = scmp.eq.s32.totalorder %s23, 1
      %p314 = scmp.ne.s32.totalorder %s309, %s311
      %p315 = scmp.eq.s32.totalorder %s23, 0
      %p316 = por %p314, %p315
      %p317 = scmp.ne.s32.totalorder %s309, %s311
      %p318 = scmp.eq.s32.totalorder %s28, 1
      %p319 = por %p317, %p318
      %p320 = scmp.ne.s32.totalorder %s311, %s312
      %p321 = scmp.eq.s32.totalorder %s28, 0
      %p322 = por %p320, %p321
      %p323 = scmp.ne.s32.totalorder %s311, %s312
      %p324 = scmp.eq.s32.totalorder %s29, 1
      %p325 = por %p323, %p324
      %p327 = scmp.ne.s32.totalorder %s312, %s326
      %p328 = scmp.eq.s32.totalorder %s29, 0
      %p329 = por %p327, %p328
      %s330 = ssub.s32 %s23, %s30
      %p331 = scmp.eq.s32.totalorder %s330, 0
      %s333 = sadd.s32 %s332, 1
      %s334 = scalar_select %p331, %s332, %s333
      %p337 = pneg %p331
      %p338 = scmp.eq.s32.totalorder %s23, 1
      %p339 = por %p337, %p338
      %p340 = scmp.ne.s32.totalorder %s332, %s335
      %p341 = scmp.eq.s32.totalorder %s23, 0
      %p342 = por %p340, %p341
      %p343 = scmp.ne.s32.totalorder %s332, %s335
      %p344 = scmp.eq.s32.totalorder %s28, 1
      %p345 = por %p343, %p344
      %p346 = scmp.ne.s32.totalorder %s335, %s336
      %p347 = scmp.eq.s32.totalorder %s28, 0
      %p348 = por %p346, %p347
      %p349 = scmp.ne.s32.totalorder %s335, %s336
      %p350 = scmp.eq.s32.totalorder %s29, 1
      %p351 = por %p349, %p350
      %p353 = scmp.ne.s32.totalorder %s336, %s352
      %p354 = scmp.eq.s32.totalorder %s29, 0
      %p355 = por %p353, %p354
      %p356 = scmp.le.s32.totalorder 1, %s23
      %p357 = scmp.lt.s32.totalorder %s23, 3
      %p358 = pnand %p356, %p357
      %p359 = pneg %p358
      // Predicated region
      $region9: #{sentence_similarity.2} parent=5 // pred_check
        _
      $region10: #{sentence_similarity.2} parent=5 // pred_check_branch
        %361 = sbr.rel (%p358) target = $region12
      $region11: #{sentence_similarity.2} parent=5 // pred_region
        %s362 = ssub.s32 %s23, 1
        // Predicated region
        $region13: #{sentence_similarity.2} parent=11 // pred_check
          %p363 = pneg %p70
        $region14: #{sentence_similarity.2} parent=11 // pred_check_branch
          %365 = sbr.rel (%p363) target = $region16
        $region15: #{sentence_similarity.2} parent=11 // pred_region
          %s367 = ssub.s32 2048, 2048
          %368 = vsyncadd [#allocation3], %s367
          %s369 = sshll.u32 [#allocation2], 4
          %s370 = int_to_ptr.vmem [resolvable:$true] %s369
          %375 = dma.hbm_to_vmem [thread:$0]  %s1, 2048, %s370, [#allocation3], 128, 128, 8
        $region16: #{sentence_similarity.2} parent=11 // pred_fallthru
          _
        // Predicated region
        $region17: #{sentence_similarity.2} parent=11 // pred_check
          %p376 = pneg %p91
        $region18: #{sentence_similarity.2} parent=11 // pred_check_branch
          %378 = sbr.rel (%p376) target = $region20
        $region19: #{sentence_similarity.2} parent=11 // pred_region
          %s380 = ssub.s32 12288, 12288
          %381 = vsyncadd [#allocation5], %s380
          %s382 = sshll.u32 [#allocation4], 4
          %s383 = int_to_ptr.vmem [resolvable:$true] %s382
          %388 = dma.hbm_to_vmem [thread:$0]  %s2, 12288, %s383, [#allocation5], 384, 384, 24
        $region20: #{sentence_similarity.2} parent=11 // pred_fallthru
          _
        // Predicated region
        $region21: #{sentence_similarity.2} parent=11 // pred_check
          %p389 = pneg %p112
        $region22: #{sentence_similarity.2} parent=11 // pred_check_branch
          %391 = sbr.rel (%p389) target = $region24
        $region23: #{sentence_similarity.2} parent=11 // pred_region
          _
        $region24: #{sentence_similarity.2} parent=11 // pred_fallthru
          _
        // Predicated region
        $region25: #{sentence_similarity.2} parent=11 // pred_check
          %p392 = pneg %p133
        $region26: #{sentence_similarity.2} parent=11 // pred_check_branch
          %394 = sbr.rel (%p392) target = $region28
        $region27: #{sentence_similarity.2} parent=11 // pred_region
          %s396 = ssub.s32 4096, 4096
          %397 = vsyncadd [#allocation5], %s396
          %s398 = sshll.u32 [#allocation6], 4
          %s399 = int_to_ptr.vmem [resolvable:$true] %s398
          %404 = dma.hbm_to_vmem [thread:$0]  %s4, 4096, %s399, [#allocation5], 128, 128, 8
        $region28: #{sentence_similarity.2} parent=11 // pred_fallthru
          _
        // Predicated region
        $region29: #{sentence_similarity.2} parent=11 // pred_check
          %p405 = pneg %p154
        $region30: #{sentence_similarity.2} parent=11 // pred_check_branch
          %407 = sbr.rel (%p405) target = $region32
        $region31: #{sentence_similarity.2} parent=11 // pred_region
          _
        $region32: #{sentence_similarity.2} parent=11 // pred_fallthru
          _
        // Predicated region
        $region33: #{sentence_similarity.2} parent=11 // pred_check
          %p408 = pneg %p175
        $region34: #{sentence_similarity.2} parent=11 // pred_check_branch
          %410 = sbr.rel (%p408) target = $region36
        $region35: #{sentence_similarity.2} parent=11 // pred_region
          %s412 = ssub.s32 8192, 8192
          %413 = vsyncadd [#allocation8], %s412
          %s414 = sshll.u32 [#allocation7], 4
          %s415 = int_to_ptr.vmem [resolvable:$true] %s414
          %420 = dma.hbm_to_vmem [thread:$0]  %s6, 8192, %s415, [#allocation8], 256, 256, 16
        $region36: #{sentence_similarity.2} parent=11 // pred_fallthru
          _
        // Predicated region
        $region37: #{sentence_similarity.2} parent=11 // pred_check
          %p421 = pneg %p196
        $region38: #{sentence_similarity.2} parent=11 // pred_check_branch
          %423 = sbr.rel (%p421) target = $region40
        $region39: #{sentence_similarity.2} parent=11 // pred_region
          _
        $region40: #{sentence_similarity.2} parent=11 // pred_fallthru
          _
        // Predicated region
        $region41: #{sentence_similarity.2} parent=11 // pred_check
          %p424 = pneg %p217
        $region42: #{sentence_similarity.2} parent=11 // pred_check_branch
          %426 = sbr.rel (%p424) target = $region44
        $region43: #{sentence_similarity.2} parent=11 // pred_region
          %s428 = ssub.s32 8192, 8192
          %429 = vsyncadd [#allocation8], %s428
          %s430 = sshll.u32 [#allocation9], 4
          %s431 = int_to_ptr.vmem [resolvable:$true] %s430
          %436 = dma.hbm_to_vmem [thread:$0]  %s8, 8192, %s431, [#allocation8], 128, 128, 8
        $region44: #{sentence_similarity.2} parent=11 // pred_fallthru
          _
        // Predicated region
        $region45: #{sentence_similarity.2} parent=11 // pred_check
          %p437 = pneg %p238
        $region46: #{sentence_similarity.2} parent=11 // pred_check_branch
          %439 = sbr.rel (%p437) target = $region48
        $region47: #{sentence_similarity.2} parent=11 // pred_region
          _
        $region48: #{sentence_similarity.2} parent=11 // pred_fallthru
          _
        // Predicated region
        $region49: #{sentence_similarity.2} parent=11 // pred_check
          %p440 = pneg %p259
        $region50: #{sentence_similarity.2} parent=11 // pred_check_branch
          %442 = sbr.rel (%p440) target = $region52
        $region51: #{sentence_similarity.2} parent=11 // pred_region
          _
        $region52: #{sentence_similarity.2} parent=11 // pred_fallthru
          _
        // Predicated region
        $region53: #{sentence_similarity.2} parent=11 // pred_check
          %p443 = pneg %p280
        $region54: #{sentence_similarity.2} parent=11 // pred_check_branch
          %445 = sbr.rel (%p443) target = $region56
        $region55: #{sentence_similarity.2} parent=11 // pred_region
          _
        $region56: #{sentence_similarity.2} parent=11 // pred_fallthru
          _
        // Predicated region
        $region57: #{sentence_similarity.2} parent=11 // pred_check
          %p446 = pneg %p301
        $region58: #{sentence_similarity.2} parent=11 // pred_check_branch
          %448 = sbr.rel (%p446) target = $region60
        $region59: #{sentence_similarity.2} parent=11 // pred_region
          _
        $region60: #{sentence_similarity.2} parent=11 // pred_fallthru
          _
        // Predicated region
        $region61: #{sentence_similarity.2} parent=11 // pred_check
          %p449 = pneg %p322
        $region62: #{sentence_similarity.2} parent=11 // pred_check_branch
          %451 = sbr.rel (%p449) target = $region64
        $region63: #{sentence_similarity.2} parent=11 // pred_region
          _
        $region64: #{sentence_similarity.2} parent=11 // pred_fallthru
          _
      $region12: #{sentence_similarity.2} parent=5 // pred_fallthru
        _
      %p452 = scmp.lt.s32.totalorder %s23, 2
      // Predicated region
      $region65: #{sentence_similarity.2} parent=5 // pred_check
        %p453 = pneg %p452
      $region66: #{sentence_similarity.2} parent=5 // pred_check_branch
        %455 = sbr.rel (%p453) target = $region68
      $region67: #{sentence_similarity.2} parent=5 // pred_region
        // Predicated region
        $region69: #{sentence_similarity.2} parent=67 // pred_check
          %p456 = pneg %p43
        $region70: #{sentence_similarity.2} parent=67 // pred_check_branch
          %458 = sbr.rel (%p456) target = $region72
        $region71: #{sentence_similarity.2} parent=67 // pred_region
          %p459 = scmp.lt.s32.totalorder %s23, 1
          %s460 = scalar_select %p459, %s23, 1
          %s461 = smul.addr %s460, 2
          %s462 = smul.addr %s461, 8
          %s463 = scalar_lea.vmem %s0, %s462
        $region72: #{sentence_similarity.2} parent=67 // pred_fallthru
          _
      $region68: #{sentence_similarity.2} parent=5 // pred_fallthru
        _
      %p464 = scmp.le.s32.totalorder 1, %s23
      %p465 = scmp.lt.s32.totalorder %s23, 3
      %p466 = pnand %p464, %p465
      %p467 = pneg %p466
      // Predicated region
      $region73: #{sentence_similarity.2} parent=5 // pred_check
        _
      $region74: #{sentence_similarity.2} parent=5 // pred_check_branch
        %469 = sbr.rel (%p466) target = $region76
      $region75: #{sentence_similarity.2} parent=5 // pred_region
        %s470 = ssub.s32 %s23, 1
        // Predicated region
        $region77: #{sentence_similarity.2} parent=75 // pred_check
          %p471 = pneg %p70
        $region78: #{sentence_similarity.2} parent=75 // pred_check_branch
          %473 = sbr.rel (%p471) target = $region80
        $region79: #{sentence_similarity.2} parent=75 // pred_region
          %474 = dma.done [#allocation3], 2048
        $region80: #{sentence_similarity.2} parent=75 // pred_fallthru
          _
        // Predicated region
        $region81: #{sentence_similarity.2} parent=75 // pred_check
          %p475 = pneg %p91
        $region82: #{sentence_similarity.2} parent=75 // pred_check_branch
          %477 = sbr.rel (%p475) target = $region84
        $region83: #{sentence_similarity.2} parent=75 // pred_region
          %478 = dma.done [#allocation5], 12288
        $region84: #{sentence_similarity.2} parent=75 // pred_fallthru
          _
        // Predicated region
        $region85: #{sentence_similarity.2} parent=75 // pred_check
          %p479 = pneg %p133
        $region86: #{sentence_similarity.2} parent=75 // pred_check_branch
          %481 = sbr.rel (%p479) target = $region88
        $region87: #{sentence_similarity.2} parent=75 // pred_region
          %482 = dma.done [#allocation5], 4096
        $region88: #{sentence_similarity.2} parent=75 // pred_fallthru
          _
        // Predicated region
        $region89: #{sentence_similarity.2} parent=75 // pred_check
          %p483 = pneg %p175
        $region90: #{sentence_similarity.2} parent=75 // pred_check_branch
          %485 = sbr.rel (%p483) target = $region92
        $region91: #{sentence_similarity.2} parent=75 // pred_region
          %486 = dma.done [#allocation8], 8192
        $region92: #{sentence_similarity.2} parent=75 // pred_fallthru
          _
        // Predicated region
        $region93: #{sentence_similarity.2} parent=75 // pred_check
          %p487 = pneg %p217
        $region94: #{sentence_similarity.2} parent=75 // pred_check_branch
          %489 = sbr.rel (%p487) target = $region96
        $region95: #{sentence_similarity.2} parent=75 // pred_region
          %490 = dma.done [#allocation8], 8192
        $region96: #{sentence_similarity.2} parent=75 // pred_fallthru
          _
        %p491 = scmp.lt.s32.totalorder %s28, 1
        %s492 = scalar_select %p491, %s28, 1
        %s493 = smul.addr %s492, 2
        %s494 = smul.addr %s493, 8
        %s495 = scalar_lea.vmem %s0, %s494
        %p496 = pneg %p49
        %p497 = pneg %p46
        %p498 = pneg %p70
        %p499 = pneg %p67
        %p500 = pneg %p91
        %p501 = pneg %p88
        %p502 = pneg %p112
        %p503 = pneg %p109
        %p504 = pneg %p133
        %p505 = pneg %p130
        %p506 = pneg %p154
        %p507 = pneg %p151
        %p508 = pneg %p175
        %p509 = pneg %p172
        %p510 = pneg %p196
        %p511 = pneg %p193
        %p512 = pneg %p217
        %p513 = pneg %p214
        %p514 = pneg %p238
        %p515 = pneg %p235
        %p516 = pneg %p259
        %p517 = pneg %p256
        %p518 = pneg %p280
        %p519 = pneg %p277
        %p520 = pneg %p301
        %p521 = pneg %p298
        %p522 = pneg %p322
        %p523 = pneg %p319
        %p524 = pneg %p348
        %p525 = pneg %p345
        %p526 = scmp.lt.s32.totalorder %s28, 1
        %s527 = scalar_select %p526, %s28, 1
        %s528 = smul.addr %s527, 2
        %s529 = scalar_lea.vmem %s14, %s528
        %p530 = scmp.lt.s32.totalorder %s28, 1
        %s531 = scalar_select %p530, %s28, 1
        %s532 = smul.addr %s531, 2
        %s533 = smul.addr %s532, 8
        %s534 = scalar_lea.vmem %s0, %s533
        %p535 = scmp.lt.s32.totalorder %s28, 1
        %s536 = scalar_select %p535, %s28, 1
        %s537 = smul.addr %s536, 2
        %s538 = scalar_lea.vmem %s14, %s537
        %v539 = vld [vmem:[%s534] sm:$0xff]
        %v540 = vld [vmem:[%s534 + $0x8] sm:$0xff]
        %v541 = vld [vmem:[#allocation2] sm:$0xff]
        %v542 = vld [vmem:[#allocation2 + $0x8] sm:$0xff]
        %v543 = vld [vmem:[#allocation2 + $0x10] sm:$0xff]
        %v544 = vld [vmem:[#allocation2 + $0x18] sm:$0xff]
        %v545 = vld [vmem:[#allocation2 + $0x20] sm:$0xff]
        %v546 = vld [vmem:[#allocation2 + $0x28] sm:$0xff]
        %v547 = vld [vmem:[#allocation2 + $0x30] sm:$0xff]
        %v548 = vld [vmem:[#allocation2 + $0x38] sm:$0xff]
        %v549 = vld [vmem:[#allocation2 + $0x40] sm:$0xff]
        %v550 = vld [vmem:[#allocation2 + $0x48] sm:$0xff]
        %v551 = vld [vmem:[#allocation2 + $0x50] sm:$0xff]
        %v552 = vld [vmem:[#allocation2 + $0x58] sm:$0xff]
        %v553 = vld [vmem:[#allocation2 + $0x60] sm:$0xff]
        %v554 = vld [vmem:[#allocation2 + $0x68] sm:$0xff]
        %v555 = vld [vmem:[#allocation2 + $0x70] sm:$0xff]
        %v556 = vld [vmem:[#allocation2 + $0x78] sm:$0xff]
        %v557 = vld [vmem:[#allocation4] sm:$0xff]
        %v558 = vld [vmem:[#allocation4 + $0x8] sm:$0xff]
        %v559 = vld [vmem:[#allocation4 + $0x10] sm:$0xff]
        %v560 = vld [vmem:[#allocation4 + $0x18] sm:$0xff]
        %v561 = vld [vmem:[#allocation4 + $0x20] sm:$0xff]
        %v562 = vld [vmem:[#allocation4 + $0x28] sm:$0xff]
        %v563 = vld [vmem:[#allocation4 + $0x30] sm:$0xff]
        %v564 = vld [vmem:[#allocation4 + $0x38] sm:$0xff]
        %v565 = vld [vmem:[#allocation4 + $0x40] sm:$0xff]
        %v566 = vld [vmem:[#allocation4 + $0x48] sm:$0xff]
        %v567 = vld [vmem:[#allocation4 + $0x50] sm:$0xff]
        %v568 = vld [vmem:[#allocation4 + $0x58] sm:$0xff]
        %v569 = vld [vmem:[#allocation4 + $0x60] sm:$0xff]
        %v570 = vld [vmem:[#allocation4 + $0x68] sm:$0xff]
        %v571 = vld [vmem:[#allocation4 + $0x70] sm:$0xff]
        %v572 = vld [vmem:[#allocation4 + $0x78] sm:$0xff]
        %v573 = vld [vmem:[#allocation4 + $0x80] sm:$0xff]
        %v574 = vld [vmem:[#allocation4 + $0x88] sm:$0xff]
        %v575 = vld [vmem:[#allocation4 + $0x90] sm:$0xff]
        %v576 = vld [vmem:[#allocation4 + $0x98] sm:$0xff]
        %v577 = vld [vmem:[#allocation4 + $0xa0] sm:$0xff]
        %v578 = vld [vmem:[#allocation4 + $0xa8] sm:$0xff]
        %v579 = vld [vmem:[#allocation4 + $0xb0] sm:$0xff]
        %v580 = vld [vmem:[#allocation4 + $0xb8] sm:$0xff]
        %v581 = vld [vmem:[#allocation4 + $0xc0] sm:$0xff]
        %v582 = vld [vmem:[#allocation4 + $0xc8] sm:$0xff]
        %v583 = vld [vmem:[#allocation4 + $0xd0] sm:$0xff]
        %v584 = vld [vmem:[#allocation4 + $0xd8] sm:$0xff]
        %v585 = vld [vmem:[#allocation4 + $0xe0] sm:$0xff]
        %v586 = vld [vmem:[#allocation4 + $0xe8] sm:$0xff]
        %v587 = vld [vmem:[#allocation4 + $0xf0] sm:$0xff]
        %v588 = vld [vmem:[#allocation4 + $0xf8] sm:$0xff]
        %v589 = vld [vmem:[#allocation4 + $0x100] sm:$0xff]
        %v590 = vld [vmem:[#allocation4 + $0x108] sm:$0xff]
        %v591 = vld [vmem:[#allocation4 + $0x110] sm:$0xff]
        %v592 = vld [vmem:[#allocation4 + $0x118] sm:$0xff]
        %v593 = vld [vmem:[#allocation4 + $0x120] sm:$0xff]
        %v594 = vld [vmem:[#allocation4 + $0x128] sm:$0xff]
        %v595 = vld [vmem:[#allocation4 + $0x130] sm:$0xff]
        %v596 = vld [vmem:[#allocation4 + $0x138] sm:$0xff]
        %v597 = vld [vmem:[#allocation4 + $0x140] sm:$0xff]
        %v598 = vld [vmem:[#allocation4 + $0x148] sm:$0xff]
        %v599 = vld [vmem:[#allocation4 + $0x150] sm:$0xff]
        %v600 = vld [vmem:[#allocation4 + $0x158] sm:$0xff]
        %v601 = vld [vmem:[#allocation4 + $0x160] sm:$0xff]
        %v602 = vld [vmem:[#allocation4 + $0x168] sm:$0xff]
        %v603 = vld [vmem:[#allocation4 + $0x170] sm:$0xff]
        %v604 = vld [vmem:[#allocation4 + $0x178] sm:$0xff]
        %v605 = vld [vmem:[%s3] sm:$0x7]
        %v606 = vld [vmem:[#allocation6] sm:$0xff]
        %v607 = vld [vmem:[#allocation6 + $0x8] sm:$0xff]
        %v608 = vld [vmem:[#allocation6 + $0x10] sm:$0xff]
        %v609 = vld [vmem:[#allocation6 + $0x18] sm:$0xff]
        %v610 = vld [vmem:[#allocation6 + $0x20] sm:$0xff]
        %v611 = vld [vmem:[#allocation6 + $0x28] sm:$0xff]
        %v612 = vld [vmem:[#allocation6 + $0x30] sm:$0xff]
        %v613 = vld [vmem:[#allocation6 + $0x38] sm:$0xff]
        %v614 = vld [vmem:[#allocation6 + $0x40] sm:$0xff]
        %v615 = vld [vmem:[#allocation6 + $0x48] sm:$0xff]
        %v616 = vld [vmem:[#allocation6 + $0x50] sm:$0xff]
        %v617 = vld [vmem:[#allocation6 + $0x58] sm:$0xff]
        %v618 = vld [vmem:[#allocation6 + $0x60] sm:$0xff]
        %v619 = vld [vmem:[#allocation6 + $0x68] sm:$0xff]
        %v620 = vld [vmem:[#allocation6 + $0x70] sm:$0xff]
        %v621 = vld [vmem:[#allocation6 + $0x78] sm:$0xff]
        %v622 = vld [vmem:[%s5] sm:$0x1]
        %v623 = vld [vmem:[#allocation7] sm:$0xff]
        %v624 = vld [vmem:[#allocation7 + $0x8] sm:$0xff]
        %v625 = vld [vmem:[#allocation7 + $0x10] sm:$0xff]
        %v626 = vld [vmem:[#allocation7 + $0x18] sm:$0xff]
        %v627 = vld [vmem:[#allocation7 + $0x20] sm:$0xff]
        %v628 = vld [vmem:[#allocation7 + $0x28] sm:$0xff]
        %v629 = vld [vmem:[#allocation7 + $0x30] sm:$0xff]
        %v630 = vld [vmem:[#allocation7 + $0x38] sm:$0xff]
        %v631 = vld [vmem:[#allocation7 + $0x40] sm:$0xff]
        %v632 = vld [vmem:[#allocation7 + $0x48] sm:$0xff]
        %v633 = vld [vmem:[#allocation7 + $0x50] sm:$0xff]
        %v634 = vld [vmem:[#allocation7 + $0x58] sm:$0xff]
        %v635 = vld [vmem:[#allocation7 + $0x60] sm:$0xff]
        %v636 = vld [vmem:[#allocation7 + $0x68] sm:$0xff]
        %v637 = vld [vmem:[#allocation7 + $0x70] sm:$0xff]
        %v638 = vld [vmem:[#allocation7 + $0x78] sm:$0xff]
        %v639 = vld [vmem:[#allocation7 + $0x80] sm:$0xff]
        %v640 = vld [vmem:[#allocation7 + $0x88] sm:$0xff]
        %v641 = vld [vmem:[#allocation7 + $0x90] sm:$0xff]
        %v642 = vld [vmem:[#allocation7 + $0x98] sm:$0xff]
        %v643 = vld [vmem:[#allocation7 + $0xa0] sm:$0xff]
        %v644 = vld [vmem:[#allocation7 + $0xa8] sm:$0xff]
        %v645 = vld [vmem:[#allocation7 + $0xb0] sm:$0xff]
        %v646 = vld [vmem:[#allocation7 + $0xb8] sm:$0xff]
        %v647 = vld [vmem:[#allocation7 + $0xc0] sm:$0xff]
        %v648 = vld [vmem:[#allocation7 + $0xc8] sm:$0xff]
        %v649 = vld [vmem:[#allocation7 + $0xd0] sm:$0xff]
        %v650 = vld [vmem:[#allocation7 + $0xd8] sm:$0xff]
        %v651 = vld [vmem:[#allocation7 + $0xe0] sm:$0xff]
        %v652 = vld [vmem:[#allocation7 + $0xe8] sm:$0xff]
        %v653 = vld [vmem:[#allocation7 + $0xf0] sm:$0xff]
        %v654 = vld [vmem:[#allocation7 + $0xf8] sm:$0xff]
        %v655 = vld [vmem:[%s7] sm:$0x3]
        %v656 = vld [vmem:[#allocation9] sm:$0xff]
        %v657 = vld [vmem:[#allocation9 + $0x8] sm:$0xff]
        %v658 = vld [vmem:[#allocation9 + $0x10] sm:$0xff]
        %v659 = vld [vmem:[#allocation9 + $0x18] sm:$0xff]
        %v660 = vld [vmem:[#allocation9 + $0x20] sm:$0xff]
        %v661 = vld [vmem:[#allocation9 + $0x28] sm:$0xff]
        %v662 = vld [vmem:[#allocation9 + $0x30] sm:$0xff]
        %v663 = vld [vmem:[#allocation9 + $0x38] sm:$0xff]
        %v664 = vld [vmem:[#allocation9 + $0x40] sm:$0xff]
        %v665 = vld [vmem:[#allocation9 + $0x48] sm:$0xff]
        %v666 = vld [vmem:[#allocation9 + $0x50] sm:$0xff]
        %v667 = vld [vmem:[#allocation9 + $0x58] sm:$0xff]
        %v668 = vld [vmem:[#allocation9 + $0x60] sm:$0xff]
        %v669 = vld [vmem:[#allocation9 + $0x68] sm:$0xff]
        %v670 = vld [vmem:[#allocation9 + $0x70] sm:$0xff]
        %v671 = vld [vmem:[#allocation9 + $0x78] sm:$0xff]
        %v672 = vld [vmem:[#allocation9 + $0x80] sm:$0xff]
        %v673 = vld [vmem:[#allocation9 + $0x88] sm:$0xff]
        %v674 = vld [vmem:[#allocation9 + $0x90] sm:$0xff]
        %v675 = vld [vmem:[#allocation9 + $0x98] sm:$0xff]
        %v676 = vld [vmem:[#allocation9 + $0xa0] sm:$0xff]
        %v677 = vld [vmem:[#allocation9 + $0xa8] sm:$0xff]
        %v678 = vld [vmem:[#allocation9 + $0xb0] sm:$0xff]
        %v679 = vld [vmem:[#allocation9 + $0xb8] sm:$0xff]
        %v680 = vld [vmem:[#allocation9 + $0xc0] sm:$0xff]
        %v681 = vld [vmem:[#allocation9 + $0xc8] sm:$0xff]
        %v682 = vld [vmem:[#allocation9 + $0xd0] sm:$0xff]
        %v683 = vld [vmem:[#allocation9 + $0xd8] sm:$0xff]
        %v684 = vld [vmem:[#allocation9 + $0xe0] sm:$0xff]
        %v685 = vld [vmem:[#allocation9 + $0xe8] sm:$0xff]
        %v686 = vld [vmem:[#allocation9 + $0xf0] sm:$0xff]
        %v687 = vld [vmem:[#allocation9 + $0xf8] sm:$0xff]
        %v688 = vld [vmem:[%s9] sm:$0x1]
        %v689 = vld [vmem:[%s10] sm:$0x1]
        %v690 = vld [vmem:[%s11] sm:$0x1]
        %v691 = vld [vmem:[%s12] sm:$0x1]
        %v692 = vld [vmem:[%s13] sm:$0x1]
        %v694 = vlaneseq
        %v695 = vshrl.u32 %v694, 7
        %v696 = vsub.s32 0, %v695
        %v697 = vrot.slane %v605, %v696
        %v698 = vlaneseq
        %v699 = vshrl.u32 %v698, 7
        %v700 = vsub.s32 1, %v699
        %v701 = vrot.slane %v605, %v700
        %v702 = vlaneseq
        %v703 = vshrl.u32 %v702, 7
        %v704 = vsub.s32 2, %v703
        %v705 = vrot.slane %v605, %v704
        %709 = vmatprep.subr.mxu0 %v558
        %710 = vmatpush1.msra.mxu0 %v557
        %711 = vmatprep.subr.mxu0 %v561
        %712 = vmatpush1.msra.mxu0 %v560
        %713 = vmatprep.subr.mxu0 %v564
        %714 = vmatpush1.msra.mxu0 %v563
        %715 = vmatprep.subr.mxu0 %v567
        %716 = vmatpush1.msra.mxu0 %v566
        %717 = vmatprep.subr.mxu0 %v570
        %718 = vmatpush1.msra.mxu0 %v569
        %719 = vmatprep.subr.mxu0 %v573
        %720 = vmatpush1.msra.mxu0 %v572
        %721 = vmatprep.subr.mxu0 %v576
        %722 = vmatpush1.msra.mxu0 %v575
        %723 = vmatprep.subr.mxu0 %v579
        %724 = vmatpush1.msra.mxu0 %v578
        %725 = vmatprep.subr.mxu0 %v582
        %726 = vmatpush1.msra.mxu0 %v581
        %727 = vmatprep.subr.mxu0 %v585
        %728 = vmatpush1.msra.mxu0 %v584
        %729 = vmatprep.subr.mxu0 %v588
        %730 = vmatpush1.msra.mxu0 %v587
        %731 = vmatprep.subr.mxu0 %v591
        %732 = vmatpush1.msra.mxu0 %v590
        %733 = vmatprep.subr.mxu0 %v594
        %734 = vmatpush1.msra.mxu0 %v593
        %735 = vmatprep.subr.mxu0 %v597
        %736 = vmatpush1.msra.mxu0 %v596
        %737 = vmatprep.subr.mxu0 %v600
        %738 = vmatpush1.msra.mxu0 %v599
        %739 = vmatprep.subr.mxu0 %v603
        %740 = vmatpush1.msra.mxu0 %v602
        %741 = vmatprep.subr.mxu0 0.0
        %742 = vmatpush1.msra.mxu0 0.0
        %743 = vmatprep.subr.mxu0 0.0
        %744 = vmatpush1.msra.mxu0 0.0
        %745 = vmatprep.subr.mxu0 0.0
        %746 = vmatpush1.msra.mxu0 0.0
        %747 = vmatprep.subr.mxu0 0.0
        %748 = vmatpush1.msra.mxu0 0.0
        %749 = vmatprep.subr.mxu0 0.0
        %750 = vmatpush1.msra.mxu0 0.0
        %751 = vmatprep.subr.mxu0 0.0
        %752 = vmatpush1.msra.mxu0 0.0
        %753 = vmatprep.subr.mxu0 0.0
        %754 = vmatpush1.msra.mxu0 0.0
        %755 = vmatprep.subr.mxu0 0.0
        %756 = vmatpush1.msra.mxu0 0.0
        %757 = vmatprep.subr.mxu0 0.0
        %758 = vmatpush1.msra.mxu0 0.0
        %759 = vmatprep.subr.mxu0 0.0
        %760 = vmatpush1.msra.mxu0 0.0
        %761 = vmatprep.subr.mxu0 0.0
        %762 = vmatpush1.msra.mxu0 0.0
        %763 = vmatprep.subr.mxu0 0.0
        %764 = vmatpush1.msra.mxu0 0.0
        %765 = vmatprep.subr.mxu0 0.0
        %766 = vmatpush1.msra.mxu0 0.0
        %767 = vmatprep.subr.mxu0 0.0
        %768 = vmatpush1.msra.mxu0 0.0
        %769 = vmatprep.subr.mxu0 0.0
        %770 = vmatpush1.msra.mxu0 0.0
        %771 = vmatprep.subr.mxu0 0.0
        %772 = vmatpush1.msra.mxu0 0.0
        %773 = vmatprep.mubr.f32.mxu0 0.0
        %774 = vmatmul.mubr.f32.gmra.mrb[0].mxu0 %v539
        %v775 = vpop.f32.mrb[0].mxu0
        %v776 = vadd.f32 %v697, %v775
        %v777 = vpop.f32.mrb[0].mxu0
        %v778 = vadd.f32 %v701, %v777
        %779 = vmatprep.mubr.f32.mxu0 0.0
        %780 = vmatmul.mubr.f32.gmra.mrb[0].mxu0 %v540
        %v781 = vpop.f32.mrb[0].mxu0
        %v782 = vadd.f32 %v697, %v781
        %v783 = vpop.f32.mrb[0].mxu0
        %v784 = vadd.f32 %v701, %v783
        %785 = vdwg.mxu0
        %786 = vmatprep.subr.mxu0 0.0
        %787 = vmatpush1.msra.mxu0 %v559
        %788 = vmatprep.subr.mxu0 0.0
        %789 = vmatpush1.msra.mxu0 %v562
        %790 = vmatprep.subr.mxu0 0.0
        %791 = vmatpush1.msra.mxu0 %v565
        %792 = vmatprep.subr.mxu0 0.0
        %793 = vmatpush1.msra.mxu0 %v568
        %794 = vmatprep.subr.mxu0 0.0
        %795 = vmatpush1.msra.mxu0 %v571
        %796 = vmatprep.subr.mxu0 0.0
        %797 = vmatpush1.msra.mxu0 %v574
        %798 = vmatprep.subr.mxu0 0.0
        %799 = vmatpush1.msra.mxu0 %v577
        %800 = vmatprep.subr.mxu0 0.0
        %801 = vmatpush1.msra.mxu0 %v580
        %802 = vmatprep.subr.mxu0 0.0
        %803 = vmatpush1.msra.mxu0 %v583
        %804 = vmatprep.subr.mxu0 0.0
        %805 = vmatpush1.msra.mxu0 %v586
        %806 = vmatprep.subr.mxu0 0.0
        %807 = vmatpush1.msra.mxu0 %v589
        %808 = vmatprep.subr.mxu0 0.0
        %809 = vmatpush1.msra.mxu0 %v592
        %810 = vmatprep.subr.mxu0 0.0
        %811 = vmatpush1.msra.mxu0 %v595
        %812 = vmatprep.subr.mxu0 0.0
        %813 = vmatpush1.msra.mxu0 %v598
        %814 = vmatprep.subr.mxu0 0.0
        %815 = vmatpush1.msra.mxu0 %v601
        %816 = vmatprep.subr.mxu0 0.0
        %817 = vmatpush1.msra.mxu0 %v604
        %818 = vmatprep.subr.mxu0 0.0
        %819 = vmatpush1.msra.mxu0 0.0
        %820 = vmatprep.subr.mxu0 0.0
        %821 = vmatpush1.msra.mxu0 0.0
        %822 = vmatprep.subr.mxu0 0.0
        %823 = vmatpush1.msra.mxu0 0.0
        %824 = vmatprep.subr.mxu0 0.0
        %825 = vmatpush1.msra.mxu0 0.0
        %826 = vmatprep.subr.mxu0 0.0
        %827 = vmatpush1.msra.mxu0 0.0
        %828 = vmatprep.subr.mxu0 0.0
        %829 = vmatpush1.msra.mxu0 0.0
        %830 = vmatprep.subr.mxu0 0.0
        %831 = vmatpush1.msra.mxu0 0.0
        %832 = vmatprep.subr.mxu0 0.0
        %833 = vmatpush1.msra.mxu0 0.0
        %834 = vmatprep.subr.mxu0 0.0
        %835 = vmatpush1.msra.mxu0 0.0
        %836 = vmatprep.subr.mxu0 0.0
        %837 = vmatpush1.msra.mxu0 0.0
        %838 = vmatprep.subr.mxu0 0.0
        %839 = vmatpush1.msra.mxu0 0.0
        %840 = vmatprep.subr.mxu0 0.0
        %841 = vmatpush1.msra.mxu0 0.0
        %842 = vmatprep.subr.mxu0 0.0
        %843 = vmatpush1.msra.mxu0 0.0
        %844 = vmatprep.subr.mxu0 0.0
        %845 = vmatpush1.msra.mxu0 0.0
        %846 = vmatprep.subr.mxu0 0.0
        %847 = vmatpush1.msra.mxu0 0.0
        %848 = vmatprep.subr.mxu0 0.0
        %849 = vmatpush1.msra.mxu0 0.0
        %850 = vmatprep.mubr.f32.mxu0 0.0
        %851 = vmatmul.mubr.f32.gmra.mrb[0].mxu0 %v539
        %v852 = vpop.f32.mrb[0].mxu0
        %v853 = vadd.f32 %v705, %v852
        %v854 = vpop.f32.mrb[0].mxu0
        %855 = vmatprep.mubr.f32.mxu0 0.0
        %856 = vmatmul.mubr.f32.gmra.mrb[0].mxu0 %v540
        %v857 = vpop.f32.mrb[0].mxu0
        %v858 = vadd.f32 %v705, %v857
        %v859 = vpop.f32.mrb[0].mxu0
        %860 = vdwg.mxu0
        %v861 = vmul.f32 %v776, %v778
        %v862 = vmul.f32 %v776, %v784
        %v863 = vmul.f32 %v782, %v778
        %v864 = vmul.f32 %v782, %v784
        %865 = vmatprep.subr.mxu0 0.0
        %866 = vmatpush1.msra.mxu0 %v541
        %867 = vmatprep.subr.mxu0 0.0
        %868 = vmatpush1.msra.mxu0 %v542
        %869 = vmatprep.subr.mxu0 0.0
        %870 = vmatpush1.msra.mxu0 %v543
        %871 = vmatprep.subr.mxu0 0.0
        %872 = vmatpush1.msra.mxu0 %v544
        %873 = vmatprep.subr.mxu0 0.0
        %874 = vmatpush1.msra.mxu0 %v545
        %875 = vmatprep.subr.mxu0 0.0
        %876 = vmatpush1.msra.mxu0 %v546
        %877 = vmatprep.subr.mxu0 0.0
        %878 = vmatpush1.msra.mxu0 %v547
        %879 = vmatprep.subr.mxu0 0.0
        %880 = vmatpush1.msra.mxu0 %v548
        %881 = vmatprep.subr.mxu0 0.0
        %882 = vmatpush1.msra.mxu0 %v549
        %883 = vmatprep.subr.mxu0 0.0
        %884 = vmatpush1.msra.mxu0 %v550
        %885 = vmatprep.subr.mxu0 0.0
        %886 = vmatpush1.msra.mxu0 %v551
        %887 = vmatprep.subr.mxu0 0.0
        %888 = vmatpush1.msra.mxu0 %v552
        %889 = vmatprep.subr.mxu0 0.0
        %890 = vmatpush1.msra.mxu0 %v553
        %891 = vmatprep.subr.mxu0 0.0
        %892 = vmatpush1.msra.mxu0 %v554
        %893 = vmatprep.subr.mxu0 0.0
        %894 = vmatpush1.msra.mxu0 %v555
        %895 = vmatprep.subr.mxu0 0.0
        %896 = vmatpush1.msra.mxu0 %v556
        %897 = vmatprep.subr.mxu0 0.0
        %898 = vmatpush1.msra.mxu0 0.0
        %899 = vmatprep.subr.mxu0 0.0
        %900 = vmatpush1.msra.mxu0 0.0
        %901 = vmatprep.subr.mxu0 0.0
        %902 = vmatpush1.msra.mxu0 0.0
        %903 = vmatprep.subr.mxu0 0.0
        %904 = vmatpush1.msra.mxu0 0.0
        %905 = vmatprep.subr.mxu0 0.0
        %906 = vmatpush1.msra.mxu0 0.0
        %907 = vmatprep.subr.mxu0 0.0
        %908 = vmatpush1.msra.mxu0 0.0
        %909 = vmatprep.subr.mxu0 0.0
        %910 = vmatpush1.msra.mxu0 0.0
        %911 = vmatprep.subr.mxu0 0.0
        %912 = vmatpush1.msra.mxu0 0.0
        %913 = vmatprep.subr.mxu0 0.0
        %914 = vmatpush1.msra.mxu0 0.0
        %915 = vmatprep.subr.mxu0 0.0
        %916 = vmatpush1.msra.mxu0 0.0
        %917 = vmatprep.subr.mxu0 0.0
        %918 = vmatpush1.msra.mxu0 0.0
        %919 = vmatprep.subr.mxu0 0.0
        %920 = vmatpush1.msra.mxu0 0.0
        %921 = vmatprep.subr.mxu0 0.0
        %922 = vmatpush1.msra.mxu0 0.0
        %923 = vmatprep.subr.mxu0 0.0
        %924 = vmatpush1.msra.mxu0 0.0
        %925 = vmatprep.subr.mxu0 0.0
        %926 = vmatpush1.msra.mxu0 0.0
        %927 = vmatprep.subr.mxu0 0.0
        %928 = vmatpush1.msra.mxu0 0.0
        %929 = vmatprep.mubr.f32.mxu0 0.0
        %930 = vmatmul.mubr.f32.gmra.mrb[0].mxu0 %v861
        %v931 = vpop.f32.mrb[0].mxu0
        %v932 = vadd.f32 0.0, %v931
        %v933 = vpop.f32.mrb[0].mxu0
        %934 = vmatprep.mubr.f32.mxu0 0.0
        %935 = vmatmul.mubr.f32.gmra.mrb[0].mxu0 %v862
        %v936 = vpop.f32.mrb[0].mxu0
        %v937 = vadd.f32 0.0, %v936
        %v938 = vpop.f32.mrb[0].mxu0
        %939 = vmatprep.mubr.f32.mxu0 0.0
        %940 = vmatmul.mubr.f32.gmra.mrb[0].mxu0 %v863
        %v941 = vpop.f32.mrb[0].mxu0
        %v942 = vadd.f32 0.0, %v941
        %v943 = vpop.f32.mrb[0].mxu0
        %944 = vmatprep.mubr.f32.mxu0 0.0
        %945 = vmatmul.mubr.f32.gmra.mrb[0].mxu0 %v864
        %v946 = vpop.f32.mrb[0].mxu0
        %v947 = vadd.f32 0.0, %v946
        %v948 = vpop.f32.mrb[0].mxu0
        %949 = vdwg.mxu0
        %v950 = vmax.f32 %v932, %v937
        %v951 = vsub.f32 %v932, %v950
        %v952 = vmul.f32 %v951, 1.442695
        %v953 = vpow.pop %v952
        %v954 = vsub.f32 %v937, %v950
        %v955 = vmul.f32 %v954, 1.442695
        %v956 = vpow.pop %v955
        %v957 = vadd.f32 %v953, %v956
        %v958 = vrcp.pop %v957
        %v959 = vmul.f32 %v953, %v958
        %v960 = vmul.f32 %v959, %v853
        %v961 = vmul.f32 %v956, %v958
        %v962 = vmul.f32 %v961, %v858
        %v963 = vadd.f32 %v960, %v962
        %v964 = vmax.f32 %v942, %v947
        %v965 = vsub.f32 %v942, %v964
        %v966 = vmul.f32 %v965, 1.442695
        %v967 = vpow.pop %v966
        %v968 = vsub.f32 %v947, %v964
        %v969 = vmul.f32 %v968, 1.442695
        %v970 = vpow.pop %v969
        %v971 = vadd.f32 %v967, %v970
        %v972 = vrcp.pop %v971
        %v973 = vmul.f32 %v967, %v972
        %v974 = vmul.f32 %v973, %v853
        %v975 = vmul.f32 %v970, %v972
        %v976 = vmul.f32 %v975, %v858
        %v977 = vadd.f32 %v974, %v976
        %v979 = vlaneseq
        %v980 = vshrl.u32 %v979, 7
        %v981 = vsub.s32 0, %v980
        %v982 = vrot.slane %v622, %v981
        %984 = vmatprep.subr.mxu0 0.0
        %985 = vmatpush1.msra.mxu0 %v606
        %986 = vmatprep.subr.mxu0 0.0
        %987 = vmatpush1.msra.mxu0 %v607
        %988 = vmatprep.subr.mxu0 0.0
        %989 = vmatpush1.msra.mxu0 %v608
        %990 = vmatprep.subr.mxu0 0.0
        %991 = vmatpush1.msra.mxu0 %v609
        %992 = vmatprep.subr.mxu0 0.0
        %993 = vmatpush1.msra.mxu0 %v610
        %994 = vmatprep.subr.mxu0 0.0
        %995 = vmatpush1.msra.mxu0 %v611
        %996 = vmatprep.subr.mxu0 0.0
        %997 = vmatpush1.msra.mxu0 %v612
        %998 = vmatprep.subr.mxu0 0.0
        %999 = vmatpush1.msra.mxu0 %v613
        %1000 = vmatprep.subr.mxu0 0.0
        %1001 = vmatpush1.msra.mxu0 %v614
        %1002 = vmatprep.subr.mxu0 0.0
        %1003 = vmatpush1.msra.mxu0 %v615
        %1004 = vmatprep.subr.mxu0 0.0
        %1005 = vmatpush1.msra.mxu0 %v616
        %1006 = vmatprep.subr.mxu0 0.0
        %1007 = vmatpush1.msra.mxu0 %v617
        %1008 = vmatprep.subr.mxu0 0.0
        %1009 = vmatpush1.msra.mxu0 %v618
        %1010 = vmatprep.subr.mxu0 0.0
        %1011 = vmatpush1.msra.mxu0 %v619
        %1012 = vmatprep.subr.mxu0 0.0
        %1013 = vmatpush1.msra.mxu0 %v620
        %1014 = vmatprep.subr.mxu0 0.0
        %1015 = vmatpush1.msra.mxu0 %v621
        %1016 = vmatprep.subr.mxu0 0.0
        %1017 = vmatpush1.msra.mxu0 0.0
        %1018 = vmatprep.subr.mxu0 0.0
        %1019 = vmatpush1.msra.mxu0 0.0
        %1020 = vmatprep.subr.mxu0 0.0
        %1021 = vmatpush1.msra.mxu0 0.0
        %1022 = vmatprep.subr.mxu0 0.0
        %1023 = vmatpush1.msra.mxu0 0.0
        %1024 = vmatprep.subr.mxu0 0.0
        %1025 = vmatpush1.msra.mxu0 0.0
        %1026 = vmatprep.subr.mxu0 0.0
        %1027 = vmatpush1.msra.mxu0 0.0
        %1028 = vmatprep.subr.mxu0 0.0
        %1029 = vmatpush1.msra.mxu0 0.0
        %1030 = vmatprep.subr.mxu0 0.0
        %1031 = vmatpush1.msra.mxu0 0.0
        %1032 = vmatprep.subr.mxu0 0.0
        %1033 = vmatpush1.msra.mxu0 0.0
        %1034 = vmatprep.subr.mxu0 0.0
        %1035 = vmatpush1.msra.mxu0 0.0
        %1036 = vmatprep.subr.mxu0 0.0
        %1037 = vmatpush1.msra.mxu0 0.0
        %1038 = vmatprep.subr.mxu0 0.0
        %1039 = vmatpush1.msra.mxu0 0.0
        %1040 = vmatprep.subr.mxu0 0.0
        %1041 = vmatpush1.msra.mxu0 0.0
        %1042 = vmatprep.subr.mxu0 0.0
        %1043 = vmatpush1.msra.mxu0 0.0
        %1044 = vmatprep.subr.mxu0 0.0
        %1045 = vmatpush1.msra.mxu0 0.0
        %1046 = vmatprep.subr.mxu0 0.0
        %1047 = vmatpush1.msra.mxu0 0.0
        %1048 = vmatprep.mubr.f32.mxu0 0.0
        %1049 = vmatmul.mubr.f32.gmra.mrb[0].mxu0 %v963
        %v1050 = vpop.f32.mrb[0].mxu0
        %v1051 = vadd.f32 %v982, %v1050
        %v1052 = vpop.f32.mrb[0].mxu0
        %1053 = vmatprep.mubr.f32.mxu0 0.0
        %1054 = vmatmul.mubr.f32.gmra.mrb[0].mxu0 %v977
        %v1055 = vpop.f32.mrb[0].mxu0
        %v1056 = vadd.f32 %v982, %v1055
        %v1057 = vpop.f32.mrb[0].mxu0
        %1058 = vdwg.mxu0
        %v1059 = vadd.f32 %v539, %v1051
        %v1060 = vadd.f32 %v540, %v1056
        %1061 = vadd.xlane.f32.xlu0 %v1059
        %v1062 = vpop.xlane.xlu0 %1061
        %1063 = vadd.xlane.f32.xlu0 %v1060
        %v1064 = vpop.xlane.xlu0 %1063
        %v1065 = vrcp.pop 128.0
        %v1066 = vmul.f32 %v1062, %v1065
        %v1067 = vmul.f32 %v1064, %v1065
        %v1068 = vsub.f32 %v1059, %v1066
        %v1069 = vsub.f32 %v1060, %v1067
        %v1070 = vmul.f32 %v1068, %v1068
        %v1071 = vmul.f32 %v1069, %v1069
        %1072 = vadd.xlane.f32.xlu0 %v1070
        %v1073 = vpop.xlane.xlu0 %1072
        %1074 = vadd.xlane.f32.xlu0 %v1071
        %v1075 = vpop.xlane.xlu0 %1074
        %v1076 = vmul.f32 %v1073, %v1065
        %v1077 = vmul.f32 %v1075, %v1065
        %v1078 = vadd.f32 %v1076, 1e-05
        %v1079 = vadd.f32 %v1077, 1e-05
        %v1080 = vrsqrt.pop %v1078
        %v1081 = vrsqrt.pop %v1079
        %v1082 = vmul.f32 %v1068, %v1080
        %v1083 = vmul.f32 %v1069, %v1081
        %v1085 = vlaneseq
        %v1086 = vshrl.u32 %v1085, 7
        %v1087 = vsub.s32 0, %v1086
        %v1088 = vrot.slane %v689, %v1087
        %v1090 = vmul.f32 %v1082, %v1088
        %v1091 = vmul.f32 %v1083, %v1088
        %v1093 = vlaneseq
        %v1094 = vshrl.u32 %v1093, 7
        %v1095 = vsub.s32 0, %v1094
        %v1096 = vrot.slane %v690, %v1095
        %v1098 = vadd.f32 %v1090, %v1096
        %v1099 = vadd.f32 %v1091, %v1096
        %v1101 = vlaneseq
        %v1102 = vshrl.u32 %v1101, 7
        %v1103 = vsub.s32 0, %v1102
        %v1104 = vrot.slane %v655, %v1103
        %v1105 = vlaneseq
        %v1106 = vshrl.u32 %v1105, 7
        %v1107 = vsub.s32 1, %v1106
        %v1108 = vrot.slane %v655, %v1107
        %1111 = vmatprep.subr.mxu0 %v624
        %1112 = vmatpush1.msra.mxu0 %v623
        %1113 = vmatprep.subr.mxu0 %v626
        %1114 = vmatpush1.msra.mxu0 %v625
        %1115 = vmatprep.subr.mxu0 %v628
        %1116 = vmatpush1.msra.mxu0 %v627
        %1117 = vmatprep.subr.mxu0 %v630
        %1118 = vmatpush1.msra.mxu0 %v629
        %1119 = vmatprep.subr.mxu0 %v632
        %1120 = vmatpush1.msra.mxu0 %v631
        %1121 = vmatprep.subr.mxu0 %v634
        %1122 = vmatpush1.msra.mxu0 %v633
        %1123 = vmatprep.subr.mxu0 %v636
        %1124 = vmatpush1.msra.mxu0 %v635
        %1125 = vmatprep.subr.mxu0 %v638
        %1126 = vmatpush1.msra.mxu0 %v637
        %1127 = vmatprep.subr.mxu0 %v640
        %1128 = vmatpush1.msra.mxu0 %v639
        %1129 = vmatprep.subr.mxu0 %v642
        %1130 = vmatpush1.msra.mxu0 %v641
        %1131 = vmatprep.subr.mxu0 %v644
        %1132 = vmatpush1.msra.mxu0 %v643
        %1133 = vmatprep.subr.mxu0 %v646
        %1134 = vmatpush1.msra.mxu0 %v645
        %1135 = vmatprep.subr.mxu0 %v648
        %1136 = vmatpush1.msra.mxu0 %v647
        %1137 = vmatprep.subr.mxu0 %v650
        %1138 = vmatpush1.msra.mxu0 %v649
        %1139 = vmatprep.subr.mxu0 %v652
        %1140 = vmatpush1.msra.mxu0 %v651
        %1141 = vmatprep.subr.mxu0 %v654
        %1142 = vmatpush1.msra.mxu0 %v653
        %1143 = vmatprep.subr.mxu0 0.0
        %1144 = vmatpush1.msra.mxu0 0.0
        %1145 = vmatprep.subr.mxu0 0.0
        %1146 = vmatpush1.msra.mxu0 0.0
        %1147 = vmatprep.subr.mxu0 0.0
        %1148 = vmatpush1.msra.mxu0 0.0
        %1149 = vmatprep.subr.mxu0 0.0
        %1150 = vmatpush1.msra.mxu0 0.0
        %1151 = vmatprep.subr.mxu0 0.0
        %1152 = vmatpush1.msra.mxu0 0.0
        %1153 = vmatprep.subr.mxu0 0.0
        %1154 = vmatpush1.msra.mxu0 0.0
        %1155 = vmatprep.subr.mxu0 0.0
        %1156 = vmatpush1.msra.mxu0 0.0
        %1157 = vmatprep.subr.mxu0 0.0
        %1158 = vmatpush1.msra.mxu0 0.0
        %1159 = vmatprep.subr.mxu0 0.0
        %1160 = vmatpush1.msra.mxu0 0.0
        %1161 = vmatprep.subr.mxu0 0.0
        %1162 = vmatpush1.msra.mxu0 0.0
        %1163 = vmatprep.subr.mxu0 0.0
        %1164 = vmatpush1.msra.mxu0 0.0
        %1165 = vmatprep.subr.mxu0 0.0
        %1166 = vmatpush1.msra.mxu0 0.0
        %1167 = vmatprep.subr.mxu0 0.0
        %1168 = vmatpush1.msra.mxu0 0.0
        %1169 = vmatprep.subr.mxu0 0.0
        %1170 = vmatpush1.msra.mxu0 0.0
        %1171 = vmatprep.subr.mxu0 0.0
        %1172 = vmatpush1.msra.mxu0 0.0
        %1173 = vmatprep.subr.mxu0 0.0
        %1174 = vmatpush1.msra.mxu0 0.0
        %1175 = vmatprep.mubr.f32.mxu0 0.0
        %1176 = vmatmul.mubr.f32.gmra.mrb[0].mxu0 %v1098
        %v1177 = vpop.f32.mrb[0].mxu0
        %v1178 = vadd.f32 %v1104, %v1177
        %v1179 = vpop.f32.mrb[0].mxu0
        %v1180 = vadd.f32 %v1108, %v1179
        %1181 = vmatprep.mubr.f32.mxu0 0.0
        %1182 = vmatmul.mubr.f32.gmra.mrb[0].mxu0 %v1099
        %v1183 = vpop.f32.mrb[0].mxu0
        %v1184 = vadd.f32 %v1104, %v1183
        %v1185 = vpop.f32.mrb[0].mxu0
        %v1186 = vadd.f32 %v1108, %v1185
        %1187 = vdwg.mxu0
        %v1188 = vmax.f32 %v1178, 0.0
        %v1189 = vmax.f32 %v1180, 0.0
        %v1190 = vmax.f32 %v1184, 0.0
        %v1191 = vmax.f32 %v1186, 0.0
        %v1193 = vlaneseq
        %v1194 = vshrl.u32 %v1193, 7
        %v1195 = vsub.s32 0, %v1194
        %v1196 = vrot.slane %v688, %v1195
        %1198 = vmatprep.subr.mxu0 0.0
        %1199 = vmatpush1.msra.mxu0 %v656
        %1200 = vmatprep.subr.mxu0 0.0
        %1201 = vmatpush1.msra.mxu0 %v657
        %1202 = vmatprep.subr.mxu0 0.0
        %1203 = vmatpush1.msra.mxu0 %v658
        %1204 = vmatprep.subr.mxu0 0.0
        %1205 = vmatpush1.msra.mxu0 %v659
        %1206 = vmatprep.subr.mxu0 0.0
        %1207 = vmatpush1.msra.mxu0 %v660
        %1208 = vmatprep.subr.mxu0 0.0
        %1209 = vmatpush1.msra.mxu0 %v661
        %1210 = vmatprep.subr.mxu0 0.0
        %1211 = vmatpush1.msra.mxu0 %v662
        %1212 = vmatprep.subr.mxu0 0.0
        %1213 = vmatpush1.msra.mxu0 %v663
        %1214 = vmatprep.subr.mxu0 0.0
        %1215 = vmatpush1.msra.mxu0 %v664
        %1216 = vmatprep.subr.mxu0 0.0
        %1217 = vmatpush1.msra.mxu0 %v665
        %1218 = vmatprep.subr.mxu0 0.0
        %1219 = vmatpush1.msra.mxu0 %v666
        %1220 = vmatprep.subr.mxu0 0.0
        %1221 = vmatpush1.msra.mxu0 %v667
        %1222 = vmatprep.subr.mxu0 0.0
        %1223 = vmatpush1.msra.mxu0 %v668
        %1224 = vmatprep.subr.mxu0 0.0
        %1225 = vmatpush1.msra.mxu0 %v669
        %1226 = vmatprep.subr.mxu0 0.0
        %1227 = vmatpush1.msra.mxu0 %v670
        %1228 = vmatprep.subr.mxu0 0.0
        %1229 = vmatpush1.msra.mxu0 %v671
        %1230 = vmatprep.subr.mxu0 0.0
        %1231 = vmatpush1.msra.mxu0 %v672
        %1232 = vmatprep.subr.mxu0 0.0
        %1233 = vmatpush1.msra.mxu0 %v673
        %1234 = vmatprep.subr.mxu0 0.0
        %1235 = vmatpush1.msra.mxu0 %v674
        %1236 = vmatprep.subr.mxu0 0.0
        %1237 = vmatpush1.msra.mxu0 %v675
        %1238 = vmatprep.subr.mxu0 0.0
        %1239 = vmatpush1.msra.mxu0 %v676
        %1240 = vmatprep.subr.mxu0 0.0
        %1241 = vmatpush1.msra.mxu0 %v677
        %1242 = vmatprep.subr.mxu0 0.0
        %1243 = vmatpush1.msra.mxu0 %v678
        %1244 = vmatprep.subr.mxu0 0.0
        %1245 = vmatpush1.msra.mxu0 %v679
        %1246 = vmatprep.subr.mxu0 0.0
        %1247 = vmatpush1.msra.mxu0 %v680
        %1248 = vmatprep.subr.mxu0 0.0
        %1249 = vmatpush1.msra.mxu0 %v681
        %1250 = vmatprep.subr.mxu0 0.0
        %1251 = vmatpush1.msra.mxu0 %v682
        %1252 = vmatprep.subr.mxu0 0.0
        %1253 = vmatpush1.msra.mxu0 %v683
        %1254 = vmatprep.subr.mxu0 0.0
        %1255 = vmatpush1.msra.mxu0 %v684
        %1256 = vmatprep.subr.mxu0 0.0
        %1257 = vmatpush1.msra.mxu0 %v685
        %1258 = vmatprep.subr.mxu0 0.0
        %1259 = vmatpush1.msra.mxu0 %v686
        %1260 = vmatprep.subr.mxu0 0.0
        %1261 = vmatpush1.msra.mxu0 %v687
        %1262 = vmatprep.mubr.f32.mxu0 %v1189
        %1263 = vmatmul.mubr.f32.gmra.mrb[0].mxu0 %v1188
        %v1264 = vpop.f32.mrb[0].mxu0
        %v1265 = vadd.f32 %v1196, %v1264
        %v1266 = vpop.f32.mrb[0].mxu0
        %1267 = vmatprep.mubr.f32.mxu0 %v1191
        %1268 = vmatmul.mubr.f32.gmra.mrb[0].mxu0 %v1190
        %v1269 = vpop.f32.mrb[0].mxu0
        %v1270 = vadd.f32 %v1196, %v1269
        %v1271 = vpop.f32.mrb[0].mxu0
        %1272 = vdwg.mxu0
        %v1273 = vadd.f32 %v1098, %v1265
        %v1274 = vadd.f32 %v1099, %v1270
        %1275 = vadd.xlane.f32.xlu0 %v1273
        %v1276 = vpop.xlane.xlu0 %1275
        %1277 = vadd.xlane.f32.xlu0 %v1274
        %v1278 = vpop.xlane.xlu0 %1277
        %v1279 = vmul.f32 %v1276, %v1065
        %v1280 = vmul.f32 %v1278, %v1065
        %v1281 = vsub.f32 %v1273, %v1279
        %v1282 = vsub.f32 %v1274, %v1280
        %v1283 = vmul.f32 %v1281, %v1281
        %v1284 = vmul.f32 %v1282, %v1282
        %1285 = vadd.xlane.f32.xlu0 %v1283
        %v1286 = vpop.xlane.xlu0 %1285
        %1287 = vadd.xlane.f32.xlu0 %v1284
        %v1288 = vpop.xlane.xlu0 %1287
        %v1289 = vmul.f32 %v1286, %v1065
        %v1290 = vmul.f32 %v1288, %v1065
        %v1291 = vadd.f32 %v1289, 1e-05
        %v1292 = vadd.f32 %v1290, 1e-05
        %v1293 = vrsqrt.pop %v1291
        %v1294 = vrsqrt.pop %v1292
        %v1295 = vmul.f32 %v1281, %v1293
        %v1296 = vmul.f32 %v1282, %v1294
        %v1298 = vlaneseq
        %v1299 = vshrl.u32 %v1298, 7
        %v1300 = vsub.s32 0, %v1299
        %v1301 = vrot.slane %v691, %v1300
        %v1303 = vmul.f32 %v1295, %v1301
        %v1304 = vmul.f32 %v1296, %v1301
        %v1306 = vlaneseq
        %v1307 = vshrl.u32 %v1306, 7
        %v1308 = vsub.s32 0, %v1307
        %v1309 = vrot.slane %v692, %v1308
        %v1311 = vadd.f32 %v1303, %v1309
        %v1312 = vadd.f32 %v1304, %v1309
        %s1313 = scalar_lea.vmem [#allocation4], 384
        %v1314 = vld [vmem:[%s1313] sm:$0xff]
        %v1315 = vld [vmem:[%s1313 + $0x8] sm:$0xff]
        %v1316 = vld [vmem:[%s1313 + $0x10] sm:$0xff]
        %v1317 = vld [vmem:[%s1313 + $0x18] sm:$0xff]
        %v1318 = vld [vmem:[%s1313 + $0x20] sm:$0xff]
        %v1319 = vld [vmem:[%s1313 + $0x28] sm:$0xff]
        %v1320 = vld [vmem:[%s1313 + $0x30] sm:$0xff]
        %v1321 = vld [vmem:[%s1313 + $0x38] sm:$0xff]
        %v1322 = vld [vmem:[%s1313 + $0x40] sm:$0xff]
        %v1323 = vld [vmem:[%s1313 + $0x48] sm:$0xff]
        %v1324 = vld [vmem:[%s1313 + $0x50] sm:$0xff]
        %v1325 = vld [vmem:[%s1313 + $0x58] sm:$0xff]
        %v1326 = vld [vmem:[%s1313 + $0x60] sm:$0xff]
        %v1327 = vld [vmem:[%s1313 + $0x68] sm:$0xff]
        %v1328 = vld [vmem:[%s1313 + $0x70] sm:$0xff]
        %v1329 = vld [vmem:[%s1313 + $0x78] sm:$0xff]
        %v1330 = vld [vmem:[%s1313 + $0x80] sm:$0xff]
        %v1331 = vld [vmem:[%s1313 + $0x88] sm:$0xff]
        %v1332 = vld [vmem:[%s1313 + $0x90] sm:$0xff]
        %v1333 = vld [vmem:[%s1313 + $0x98] sm:$0xff]
        %v1334 = vld [vmem:[%s1313 + $0xa0] sm:$0xff]
        %v1335 = vld [vmem:[%s1313 + $0xa8] sm:$0xff]
        %v1336 = vld [vmem:[%s1313 + $0xb0] sm:$0xff]
        %v1337 = vld [vmem:[%s1313 + $0xb8] sm:$0xff]
        %v1338 = vld [vmem:[%s1313 + $0xc0] sm:$0xff]
        %v1339 = vld [vmem:[%s1313 + $0xc8] sm:$0xff]
        %v1340 = vld [vmem:[%s1313 + $0xd0] sm:$0xff]
        %v1341 = vld [vmem:[%s1313 + $0xd8] sm:$0xff]
        %v1342 = vld [vmem:[%s1313 + $0xe0] sm:$0xff]
        %v1343 = vld [vmem:[%s1313 + $0xe8] sm:$0xff]
        %v1344 = vld [vmem:[%s1313 + $0xf0] sm:$0xff]
        %v1345 = vld [vmem:[%s1313 + $0xf8] sm:$0xff]
        %v1346 = vld [vmem:[%s1313 + $0x100] sm:$0xff]
        %v1347 = vld [vmem:[%s1313 + $0x108] sm:$0xff]
        %v1348 = vld [vmem:[%s1313 + $0x110] sm:$0xff]
        %v1349 = vld [vmem:[%s1313 + $0x118] sm:$0xff]
        %v1350 = vld [vmem:[%s1313 + $0x120] sm:$0xff]
        %v1351 = vld [vmem:[%s1313 + $0x128] sm:$0xff]
        %v1352 = vld [vmem:[%s1313 + $0x130] sm:$0xff]
        %v1353 = vld [vmem:[%s1313 + $0x138] sm:$0xff]
        %v1354 = vld [vmem:[%s1313 + $0x140] sm:$0xff]
        %v1355 = vld [vmem:[%s1313 + $0x148] sm:$0xff]
        %v1356 = vld [vmem:[%s1313 + $0x150] sm:$0xff]
        %v1357 = vld [vmem:[%s1313 + $0x158] sm:$0xff]
        %v1358 = vld [vmem:[%s1313 + $0x160] sm:$0xff]
        %v1359 = vld [vmem:[%s1313 + $0x168] sm:$0xff]
        %v1360 = vld [vmem:[%s1313 + $0x170] sm:$0xff]
        %v1361 = vld [vmem:[%s1313 + $0x178] sm:$0xff]
        %s1362 = scalar_lea.vmem %s3, 3
        %v1363 = vld [vmem:[%s1362] sm:$0x7]
        %s1364 = scalar_lea.vmem [#allocation6], 128
        %v1365 = vld [vmem:[%s1364] sm:$0xff]
        %v1366 = vld [vmem:[%s1364 + $0x8] sm:$0xff]
        %v1367 = vld [vmem:[%s1364 + $0x10] sm:$0xff]
        %v1368 = vld [vmem:[%s1364 + $0x18] sm:$0xff]
        %v1369 = vld [vmem:[%s1364 + $0x20] sm:$0xff]
        %v1370 = vld [vmem:[%s1364 + $0x28] sm:$0xff]
        %v1371 = vld [vmem:[%s1364 + $0x30] sm:$0xff]
        %v1372 = vld [vmem:[%s1364 + $0x38] sm:$0xff]
        %v1373 = vld [vmem:[%s1364 + $0x40] sm:$0xff]
        %v1374 = vld [vmem:[%s1364 + $0x48] sm:$0xff]
        %v1375 = vld [vmem:[%s1364 + $0x50] sm:$0xff]
        %v1376 = vld [vmem:[%s1364 + $0x58] sm:$0xff]
        %v1377 = vld [vmem:[%s1364 + $0x60] sm:$0xff]
        %v1378 = vld [vmem:[%s1364 + $0x68] sm:$0xff]
        %v1379 = vld [vmem:[%s1364 + $0x70] sm:$0xff]
        %v1380 = vld [vmem:[%s1364 + $0x78] sm:$0xff]
        %s1381 = scalar_lea.vmem %s5, 1
        %v1382 = vld [vmem:[%s1381] sm:$0x1]
        %s1383 = scalar_lea.vmem [#allocation7], 256
        %v1384 = vld [vmem:[%s1383] sm:$0xff]
        %v1385 = vld [vmem:[%s1383 + $0x8] sm:$0xff]
        %v1386 = vld [vmem:[%s1383 + $0x10] sm:$0xff]
        %v1387 = vld [vmem:[%s1383 + $0x18] sm:$0xff]
        %v1388 = vld [vmem:[%s1383 + $0x20] sm:$0xff]
        %v1389 = vld [vmem:[%s1383 + $0x28] sm:$0xff]
        %v1390 = vld [vmem:[%s1383 + $0x30] sm:$0xff]
        %v1391 = vld [vmem:[%s1383 + $0x38] sm:$0xff]
        %v1392 = vld [vmem:[%s1383 + $0x40] sm:$0xff]
        %v1393 = vld [vmem:[%s1383 + $0x48] sm:$0xff]
        %v1394 = vld [vmem:[%s1383 + $0x50] sm:$0xff]
        %v1395 = vld [vmem:[%s1383 + $0x58] sm:$0xff]
        %v1396 = vld [vmem:[%s1383 + $0x60] sm:$0xff]
        %v1397 = vld [vmem:[%s1383 + $0x68] sm:$0xff]
        %v1398 = vld [vmem:[%s1383 + $0x70] sm:$0xff]
        %v1399 = vld [vmem:[%s1383 + $0x78] sm:$0xff]
        %v1400 = vld [vmem:[%s1383 + $0x80] sm:$0xff]
        %v1401 = vld [vmem:[%s1383 + $0x88] sm:$0xff]
        %v1402 = vld [vmem:[%s1383 + $0x90] sm:$0xff]
        %v1403 = vld [vmem:[%s1383 + $0x98] sm:$0xff]
        %v1404 = vld [vmem:[%s1383 + $0xa0] sm:$0xff]
        %v1405 = vld [vmem:[%s1383 + $0xa8] sm:$0xff]
        %v1406 = vld [vmem:[%s1383 + $0xb0] sm:$0xff]
        %v1407 = vld [vmem:[%s1383 + $0xb8] sm:$0xff]
        %v1408 = vld [vmem:[%s1383 + $0xc0] sm:$0xff]
        %v1409 = vld [vmem:[%s1383 + $0xc8] sm:$0xff]
        %v1410 = vld [vmem:[%s1383 + $0xd0] sm:$0xff]
        %v1411 = vld [vmem:[%s1383 + $0xd8] sm:$0xff]
        %v1412 = vld [vmem:[%s1383 + $0xe0] sm:$0xff]
        %v1413 = vld [vmem:[%s1383 + $0xe8] sm:$0xff]
        %v1414 = vld [vmem:[%s1383 + $0xf0] sm:$0xff]
        %v1415 = vld [vmem:[%s1383 + $0xf8] sm:$0xff]
        %s1416 = scalar_lea.vmem %s7, 2
        %v1417 = vld [vmem:[%s1416] sm:$0x3]
        %s1418 = scalar_lea.vmem [#allocation9], 256
        %v1419 = vld [vmem:[%s1418] sm:$0xff]
        %v1420 = vld [vmem:[%s1418 + $0x8] sm:$0xff]
        %v1421 = vld [vmem:[%s1418 + $0x10] sm:$0xff]
        %v1422 = vld [vmem:[%s1418 + $0x18] sm:$0xff]
        %v1423 = vld [vmem:[%s1418 + $0x20] sm:$0xff]
        %v1424 = vld [vmem:[%s1418 + $0x28] sm:$0xff]
        %v1425 = vld [vmem:[%s1418 + $0x30] sm:$0xff]
        %v1426 = vld [vmem:[%s1418 + $0x38] sm:$0xff]
        %v1427 = vld [vmem:[%s1418 + $0x40] sm:$0xff]
        %v1428 = vld [vmem:[%s1418 + $0x48] sm:$0xff]
        %v1429 = vld [vmem:[%s1418 + $0x50] sm:$0xff]
        %v1430 = vld [vmem:[%s1418 + $0x58] sm:$0xff]
        %v1431 = vld [vmem:[%s1418 + $0x60] sm:$0xff]
        %v1432 = vld [vmem:[%s1418 + $0x68] sm:$0xff]
        %v1433 = vld [vmem:[%s1418 + $0x70] sm:$0xff]
        %v1434 = vld [vmem:[%s1418 + $0x78] sm:$0xff]
        %v1435 = vld [vmem:[%s1418 + $0x80] sm:$0xff]
        %v1436 = vld [vmem:[%s1418 + $0x88] sm:$0xff]
        %v1437 = vld [vmem:[%s1418 + $0x90] sm:$0xff]
        %v1438 = vld [vmem:[%s1418 + $0x98] sm:$0xff]
        %v1439 = vld [vmem:[%s1418 + $0xa0] sm:$0xff]
        %v1440 = vld [vmem:[%s1418 + $0xa8] sm:$0xff]
        %v1441 = vld [vmem:[%s1418 + $0xb0] sm:$0xff]
        %v1442 = vld [vmem:[%s1418 + $0xb8] sm:$0xff]
        %v1443 = vld [vmem:[%s1418 + $0xc0] sm:$0xff]
        %v1444 = vld [vmem:[%s1418 + $0xc8] sm:$0xff]
        %v1445 = vld [vmem:[%s1418 + $0xd0] sm:$0xff]
        %v1446 = vld [vmem:[%s1418 + $0xd8] sm:$0xff]
        %v1447 = vld [vmem:[%s1418 + $0xe0] sm:$0xff]
        %v1448 = vld [vmem:[%s1418 + $0xe8] sm:$0xff]
        %v1449 = vld [vmem:[%s1418 + $0xf0] sm:$0xff]
        %v1450 = vld [vmem:[%s1418 + $0xf8] sm:$0xff]
        %s1451 = scalar_lea.vmem %s9, 1
        %v1452 = vld [vmem:[%s1451] sm:$0x1]
        %s1453 = scalar_lea.vmem %s10, 1
        %v1454 = vld [vmem:[%s1453] sm:$0x1]
        %s1455 = scalar_lea.vmem %s11, 1
        %v1456 = vld [vmem:[%s1455] sm:$0x1]
        %s1457 = scalar_lea.vmem %s12, 1
        %v1458 = vld [vmem:[%s1457] sm:$0x1]
        %s1459 = scalar_lea.vmem %s13, 1
        %v1460 = vld [vmem:[%s1459] sm:$0x1]
        %v1462 = vlaneseq
        %v1463 = vshrl.u32 %v1462, 7
        %v1464 = vsub.s32 0, %v1463
        %v1465 = vrot.slane %v1363, %v1464
        %v1466 = vlaneseq
        %v1467 = vshrl.u32 %v1466, 7
        %v1468 = vsub.s32 1, %v1467
        %v1469 = vrot.slane %v1363, %v1468
        %v1470 = vlaneseq
        %v1471 = vshrl.u32 %v1470, 7
        %v1472 = vsub.s32 2, %v1471
        %v1473 = vrot.slane %v1363, %v1472
        %1477 = vmatprep.subr.mxu0 %v1315
        %1478 = vmatpush1.msra.mxu0 %v1314
        %1479 = vmatprep.subr.mxu0 %v1318
        %1480 = vmatpush1.msra.mxu0 %v1317
        %1481 = vmatprep.subr.mxu0 %v1321
        %1482 = vmatpush1.msra.mxu0 %v1320
        %1483 = vmatprep.subr.mxu0 %v1324
        %1484 = vmatpush1.msra.mxu0 %v1323
        %1485 = vmatprep.subr.mxu0 %v1327
        %1486 = vmatpush1.msra.mxu0 %v1326
        %1487 = vmatprep.subr.mxu0 %v1330
        %1488 = vmatpush1.msra.mxu0 %v1329
        %1489 = vmatprep.subr.mxu0 %v1333
        %1490 = vmatpush1.msra.mxu0 %v1332
        %1491 = vmatprep.subr.mxu0 %v1336
        %1492 = vmatpush1.msra.mxu0 %v1335
        %1493 = vmatprep.subr.mxu0 %v1339
        %1494 = vmatpush1.msra.mxu0 %v1338
        %1495 = vmatprep.subr.mxu0 %v1342
        %1496 = vmatpush1.msra.mxu0 %v1341
        %1497 = vmatprep.subr.mxu0 %v1345
        %1498 = vmatpush1.msra.mxu0 %v1344
        %1499 = vmatprep.subr.mxu0 %v1348
        %1500 = vmatpush1.msra.mxu0 %v1347
        %1501 = vmatprep.subr.mxu0 %v1351
        %1502 = vmatpush1.msra.mxu0 %v1350
        %1503 = vmatprep.subr.mxu0 %v1354
        %1504 = vmatpush1.msra.mxu0 %v1353
        %1505 = vmatprep.subr.mxu0 %v1357
        %1506 = vmatpush1.msra.mxu0 %v1356
        %1507 = vmatprep.subr.mxu0 %v1360
        %1508 = vmatpush1.msra.mxu0 %v1359
        %1509 = vmatprep.subr.mxu0 0.0
        %1510 = vmatpush1.msra.mxu0 0.0
        %1511 = vmatprep.subr.mxu0 0.0
        %1512 = vmatpush1.msra.mxu0 0.0
        %1513 = vmatprep.subr.mxu0 0.0
        %1514 = vmatpush1.msra.mxu0 0.0
        %1515 = vmatprep.subr.mxu0 0.0
        %1516 = vmatpush1.msra.mxu0 0.0
        %1517 = vmatprep.subr.mxu0 0.0
        %1518 = vmatpush1.msra.mxu0 0.0
        %1519 = vmatprep.subr.mxu0 0.0
        %1520 = vmatpush1.msra.mxu0 0.0
        %1521 = vmatprep.subr.mxu0 0.0
        %1522 = vmatpush1.msra.mxu0 0.0
        %1523 = vmatprep.subr.mxu0 0.0
        %1524 = vmatpush1.msra.mxu0 0.0
        %1525 = vmatprep.subr.mxu0 0.0
        %1526 = vmatpush1.msra.mxu0 0.0
        %1527 = vmatprep.subr.mxu0 0.0
        %1528 = vmatpush1.msra.mxu0 0.0
        %1529 = vmatprep.subr.mxu0 0.0
        %1530 = vmatpush1.msra.mxu0 0.0
        %1531 = vmatprep.subr.mxu0 0.0
        %1532 = vmatpush1.msra.mxu0 0.0
        %1533 = vmatprep.subr.mxu0 0.0
        %1534 = vmatpush1.msra.mxu0 0.0
        %1535 = vmatprep.subr.mxu0 0.0
        %1536 = vmatpush1.msra.mxu0 0.0
        %1537 = vmatprep.subr.mxu0 0.0
        %1538 = vmatpush1.msra.mxu0 0.0
        %1539 = vmatprep.subr.mxu0 0.0
        %1540 = vmatpush1.msra.mxu0 0.0
        %1541 = vmatprep.mubr.f32.mxu0 0.0
        %1542 = vmatmul.mubr.f32.gmra.mrb[0].mxu0 %v1311
        %v1543 = vpop.f32.mrb[0].mxu0
        %v1544 = vadd.f32 %v1465, %v1543
        %v1545 = vpop.f32.mrb[0].mxu0
        %v1546 = vadd.f32 %v1469, %v1545
        %1547 = vmatprep.mubr.f32.mxu0 0.0
        %1548 = vmatmul.mubr.f32.gmra.mrb[0].mxu0 %v1312
        %v1549 = vpop.f32.mrb[0].mxu0
        %v1550 = vadd.f32 %v1465, %v1549
        %v1551 = vpop.f32.mrb[0].mxu0
        %v1552 = vadd.f32 %v1469, %v1551
        %1553 = vdwg.mxu0
        %1554 = vmatprep.subr.mxu0 0.0
        %1555 = vmatpush1.msra.mxu0 %v1316
        %1556 = vmatprep.subr.mxu0 0.0
        %1557 = vmatpush1.msra.mxu0 %v1319
        %1558 = vmatprep.subr.mxu0 0.0
        %1559 = vmatpush1.msra.mxu0 %v1322
        %1560 = vmatprep.subr.mxu0 0.0
        %1561 = vmatpush1.msra.mxu0 %v1325
        %1562 = vmatprep.subr.mxu0 0.0
        %1563 = vmatpush1.msra.mxu0 %v1328
        %1564 = vmatprep.subr.mxu0 0.0
        %1565 = vmatpush1.msra.mxu0 %v1331
        %1566 = vmatprep.subr.mxu0 0.0
        %1567 = vmatpush1.msra.mxu0 %v1334
        %1568 = vmatprep.subr.mxu0 0.0
        %1569 = vmatpush1.msra.mxu0 %v1337
        %1570 = vmatprep.subr.mxu0 0.0
        %1571 = vmatpush1.msra.mxu0 %v1340
        %1572 = vmatprep.subr.mxu0 0.0
        %1573 = vmatpush1.msra.mxu0 %v1343
        %1574 = vmatprep.subr.mxu0 0.0
        %1575 = vmatpush1.msra.mxu0 %v1346
        %1576 = vmatprep.subr.mxu0 0.0
        %1577 = vmatpush1.msra.mxu0 %v1349
        %1578 = vmatprep.subr.mxu0 0.0
        %1579 = vmatpush1.msra.mxu0 %v1352
        %1580 = vmatprep.subr.mxu0 0.0
        %1581 = vmatpush1.msra.mxu0 %v1355
        %1582 = vmatprep.subr.mxu0 0.0
        %1583 = vmatpush1.msra.mxu0 %v1358
        %1584 = vmatprep.subr.mxu0 0.0
        %1585 = vmatpush1.msra.mxu0 %v1361
        %1586 = vmatprep.subr.mxu0 0.0
        %1587 = vmatpush1.msra.mxu0 0.0
        %1588 = vmatprep.subr.mxu0 0.0
        %1589 = vmatpush1.msra.mxu0 0.0
        %1590 = vmatprep.subr.mxu0 0.0
        %1591 = vmatpush1.msra.mxu0 0.0
        %1592 = vmatprep.subr.mxu0 0.0
        %1593 = vmatpush1.msra.mxu0 0.0
        %1594 = vmatprep.subr.mxu0 0.0
        %1595 = vmatpush1.msra.mxu0 0.0
        %1596 = vmatprep.subr.mxu0 0.0
        %1597 = vmatpush1.msra.mxu0 0.0
        %1598 = vmatprep.subr.mxu0 0.0
        %1599 = vmatpush1.msra.mxu0 0.0
        %1600 = vmatprep.subr.mxu0 0.0
        %1601 = vmatpush1.msra.mxu0 0.0
        %1602 = vmatprep.subr.mxu0 0.0
        %1603 = vmatpush1.msra.mxu0 0.0
        %1604 = vmatprep.subr.mxu0 0.0
        %1605 = vmatpush1.msra.mxu0 0.0
        %1606 = vmatprep.subr.mxu0 0.0
        %1607 = vmatpush1.msra.mxu0 0.0
        %1608 = vmatprep.subr.mxu0 0.0
        %1609 = vmatpush1.msra.mxu0 0.0
        %1610 = vmatprep.subr.mxu0 0.0
        %1611 = vmatpush1.msra.mxu0 0.0
        %1612 = vmatprep.subr.mxu0 0.0
        %1613 = vmatpush1.msra.mxu0 0.0
        %1614 = vmatprep.subr.mxu0 0.0
        %1615 = vmatpush1.msra.mxu0 0.0
        %1616 = vmatprep.subr.mxu0 0.0
        %1617 = vmatpush1.msra.mxu0 0.0
        %1618 = vmatprep.mubr.f32.mxu0 0.0
        %1619 = vmatmul.mubr.f32.gmra.mrb[0].mxu0 %v1311
        %v1620 = vpop.f32.mrb[0].mxu0
        %v1621 = vadd.f32 %v1473, %v1620
        %v1622 = vpop.f32.mrb[0].mxu0
        %1623 = vmatprep.mubr.f32.mxu0 0.0
        %1624 = vmatmul.mubr.f32.gmra.mrb[0].mxu0 %v1312
        %v1625 = vpop.f32.mrb[0].mxu0
        %v1626 = vadd.f32 %v1473, %v1625
        %v1627 = vpop.f32.mrb[0].mxu0
        %1628 = vdwg.mxu0
        %v1629 = vmul.f32 %v1544, %v1546
        %v1630 = vmul.f32 %v1544, %v1552
        %v1631 = vmul.f32 %v1550, %v1546
        %v1632 = vmul.f32 %v1550, %v1552
        %1633 = vmatprep.subr.mxu0 0.0
        %1634 = vmatpush1.msra.mxu0 %v541
        %1635 = vmatprep.subr.mxu0 0.0
        %1636 = vmatpush1.msra.mxu0 %v542
        %1637 = vmatprep.subr.mxu0 0.0
        %1638 = vmatpush1.msra.mxu0 %v543
        %1639 = vmatprep.subr.mxu0 0.0
        %1640 = vmatpush1.msra.mxu0 %v544
        %1641 = vmatprep.subr.mxu0 0.0
        %1642 = vmatpush1.msra.mxu0 %v545
        %1643 = vmatprep.subr.mxu0 0.0
        %1644 = vmatpush1.msra.mxu0 %v546
        %1645 = vmatprep.subr.mxu0 0.0
        %1646 = vmatpush1.msra.mxu0 %v547
        %1647 = vmatprep.subr.mxu0 0.0
        %1648 = vmatpush1.msra.mxu0 %v548
        %1649 = vmatprep.subr.mxu0 0.0
        %1650 = vmatpush1.msra.mxu0 %v549
        %1651 = vmatprep.subr.mxu0 0.0
        %1652 = vmatpush1.msra.mxu0 %v550
        %1653 = vmatprep.subr.mxu0 0.0
        %1654 = vmatpush1.msra.mxu0 %v551
        %1655 = vmatprep.subr.mxu0 0.0
        %1656 = vmatpush1.msra.mxu0 %v552
        %1657 = vmatprep.subr.mxu0 0.0
        %1658 = vmatpush1.msra.mxu0 %v553
        %1659 = vmatprep.subr.mxu0 0.0
        %1660 = vmatpush1.msra.mxu0 %v554
        %1661 = vmatprep.subr.mxu0 0.0
        %1662 = vmatpush1.msra.mxu0 %v555
        %1663 = vmatprep.subr.mxu0 0.0
        %1664 = vmatpush1.msra.mxu0 %v556
        %1665 = vmatprep.subr.mxu0 0.0
        %1666 = vmatpush1.msra.mxu0 0.0
        %1667 = vmatprep.subr.mxu0 0.0
        %1668 = vmatpush1.msra.mxu0 0.0
        %1669 = vmatprep.subr.mxu0 0.0
        %1670 = vmatpush1.msra.mxu0 0.0
        %1671 = vmatprep.subr.mxu0 0.0
        %1672 = vmatpush1.msra.mxu0 0.0
        %1673 = vmatprep.subr.mxu0 0.0
        %1674 = vmatpush1.msra.mxu0 0.0
        %1675 = vmatprep.subr.mxu0 0.0
        %1676 = vmatpush1.msra.mxu0 0.0
        %1677 = vmatprep.subr.mxu0 0.0
        %1678 = vmatpush1.msra.mxu0 0.0
        %1679 = vmatprep.subr.mxu0 0.0
        %1680 = vmatpush1.msra.mxu0 0.0
        %1681 = vmatprep.subr.mxu0 0.0
        %1682 = vmatpush1.msra.mxu0 0.0
        %1683 = vmatprep.subr.mxu0 0.0
        %1684 = vmatpush1.msra.mxu0 0.0
        %1685 = vmatprep.subr.mxu0 0.0
        %1686 = vmatpush1.msra.mxu0 0.0
        %1687 = vmatprep.subr.mxu0 0.0
        %1688 = vmatpush1.msra.mxu0 0.0
        %1689 = vmatprep.subr.mxu0 0.0
        %1690 = vmatpush1.msra.mxu0 0.0
        %1691 = vmatprep.subr.mxu0 0.0
        %1692 = vmatpush1.msra.mxu0 0.0
        %1693 = vmatprep.subr.mxu0 0.0
        %1694 = vmatpush1.msra.mxu0 0.0
        %1695 = vmatprep.subr.mxu0 0.0
        %1696 = vmatpush1.msra.mxu0 0.0
        %1697 = vmatprep.mubr.f32.mxu0 0.0
        %1698 = vmatmul.mubr.f32.gmra.mrb[0].mxu0 %v1629
        %v1699 = vpop.f32.mrb[0].mxu0
        %v1700 = vadd.f32 0.0, %v1699
        %v1701 = vpop.f32.mrb[0].mxu0
        %1702 = vmatprep.mubr.f32.mxu0 0.0
        %1703 = vmatmul.mubr.f32.gmra.mrb[0].mxu0 %v1630
        %v1704 = vpop.f32.mrb[0].mxu0
        %v1705 = vadd.f32 0.0, %v1704
        %v1706 = vpop.f32.mrb[0].mxu0
        %1707 = vmatprep.mubr.f32.mxu0 0.0
        %1708 = vmatmul.mubr.f32.gmra.mrb[0].mxu0 %v1631
        %v1709 = vpop.f32.mrb[0].mxu0
        %v1710 = vadd.f32 0.0, %v1709
        %v1711 = vpop.f32.mrb[0].mxu0
        %1712 = vmatprep.mubr.f32.mxu0 0.0
        %1713 = vmatmul.mubr.f32.gmra.mrb[0].mxu0 %v1632
        %v1714 = vpop.f32.mrb[0].mxu0
        %v1715 = vadd.f32 0.0, %v1714
        %v1716 = vpop.f32.mrb[0].mxu0
        %1717 = vdwg.mxu0
        %v1718 = vmax.f32 %v1700, %v1705
        %v1719 = vsub.f32 %v1700, %v1718
        %v1720 = vmul.f32 %v1719, 1.442695
        %v1721 = vpow.pop %v1720
        %v1722 = vsub.f32 %v1705, %v1718
        %v1723 = vmul.f32 %v1722, 1.442695
        %v1724 = vpow.pop %v1723
        %v1725 = vadd.f32 %v1721, %v1724
        %v1726 = vrcp.pop %v1725
        %v1727 = vmul.f32 %v1721, %v1726
        %v1728 = vmul.f32 %v1727, %v1621
        %v1729 = vmul.f32 %v1724, %v1726
        %v1730 = vmul.f32 %v1729, %v1626
        %v1731 = vadd.f32 %v1728, %v1730
        %v1732 = vmax.f32 %v1710, %v1715
        %v1733 = vsub.f32 %v1710, %v1732
        %v1734 = vmul.f32 %v1733, 1.442695
        %v1735 = vpow.pop %v1734
        %v1736 = vsub.f32 %v1715, %v1732
        %v1737 = vmul.f32 %v1736, 1.442695
        %v1738 = vpow.pop %v1737
        %v1739 = vadd.f32 %v1735, %v1738
        %v1740 = vrcp.pop %v1739
        %v1741 = vmul.f32 %v1735, %v1740
        %v1742 = vmul.f32 %v1741, %v1621
        %v1743 = vmul.f32 %v1738, %v1740
        %v1744 = vmul.f32 %v1743, %v1626
        %v1745 = vadd.f32 %v1742, %v1744
        %v1747 = vlaneseq
        %v1748 = vshrl.u32 %v1747, 7
        %v1749 = vsub.s32 0, %v1748
        %v1750 = vrot.slane %v1382, %v1749
        %1752 = vmatprep.subr.mxu0 0.0
        %1753 = vmatpush1.msra.mxu0 %v1365
        %1754 = vmatprep.subr.mxu0 0.0
        %1755 = vmatpush1.msra.mxu0 %v1366
        %1756 = vmatprep.subr.mxu0 0.0
        %1757 = vmatpush1.msra.mxu0 %v1367
        %1758 = vmatprep.subr.mxu0 0.0
        %1759 = vmatpush1.msra.mxu0 %v1368
        %1760 = vmatprep.subr.mxu0 0.0
        %1761 = vmatpush1.msra.mxu0 %v1369
        %1762 = vmatprep.subr.mxu0 0.0
        %1763 = vmatpush1.msra.mxu0 %v1370
        %1764 = vmatprep.subr.mxu0 0.0
        %1765 = vmatpush1.msra.mxu0 %v1371
        %1766 = vmatprep.subr.mxu0 0.0
        %1767 = vmatpush1.msra.mxu0 %v1372
        %1768 = vmatprep.subr.mxu0 0.0
        %1769 = vmatpush1.msra.mxu0 %v1373
        %1770 = vmatprep.subr.mxu0 0.0
        %1771 = vmatpush1.msra.mxu0 %v1374
        %1772 = vmatprep.subr.mxu0 0.0
        %1773 = vmatpush1.msra.mxu0 %v1375
        %1774 = vmatprep.subr.mxu0 0.0
        %1775 = vmatpush1.msra.mxu0 %v1376
        %1776 = vmatprep.subr.mxu0 0.0
        %1777 = vmatpush1.msra.mxu0 %v1377
        %1778 = vmatprep.subr.mxu0 0.0
        %1779 = vmatpush1.msra.mxu0 %v1378
        %1780 = vmatprep.subr.mxu0 0.0
        %1781 = vmatpush1.msra.mxu0 %v1379
        %1782 = vmatprep.subr.mxu0 0.0
        %1783 = vmatpush1.msra.mxu0 %v1380
        %1784 = vmatprep.subr.mxu0 0.0
        %1785 = vmatpush1.msra.mxu0 0.0
        %1786 = vmatprep.subr.mxu0 0.0
        %1787 = vmatpush1.msra.mxu0 0.0
        %1788 = vmatprep.subr.mxu0 0.0
        %1789 = vmatpush1.msra.mxu0 0.0
        %1790 = vmatprep.subr.mxu0 0.0
        %1791 = vmatpush1.msra.mxu0 0.0
        %1792 = vmatprep.subr.mxu0 0.0
        %1793 = vmatpush1.msra.mxu0 0.0
        %1794 = vmatprep.subr.mxu0 0.0
        %1795 = vmatpush1.msra.mxu0 0.0
        %1796 = vmatprep.subr.mxu0 0.0
        %1797 = vmatpush1.msra.mxu0 0.0
        %1798 = vmatprep.subr.mxu0 0.0
        %1799 = vmatpush1.msra.mxu0 0.0
        %1800 = vmatprep.subr.mxu0 0.0
        %1801 = vmatpush1.msra.mxu0 0.0
        %1802 = vmatprep.subr.mxu0 0.0
        %1803 = vmatpush1.msra.mxu0 0.0
        %1804 = vmatprep.subr.mxu0 0.0
        %1805 = vmatpush1.msra.mxu0 0.0
        %1806 = vmatprep.subr.mxu0 0.0
        %1807 = vmatpush1.msra.mxu0 0.0
        %1808 = vmatprep.subr.mxu0 0.0
        %1809 = vmatpush1.msra.mxu0 0.0
        %1810 = vmatprep.subr.mxu0 0.0
        %1811 = vmatpush1.msra.mxu0 0.0
        %1812 = vmatprep.subr.mxu0 0.0
        %1813 = vmatpush1.msra.mxu0 0.0
        %1814 = vmatprep.subr.mxu0 0.0
        %1815 = vmatpush1.msra.mxu0 0.0
        %1816 = vmatprep.mubr.f32.mxu0 0.0
        %1817 = vmatmul.mubr.f32.gmra.mrb[0].mxu0 %v1731
        %v1818 = vpop.f32.mrb[0].mxu0
        %v1819 = vadd.f32 %v1750, %v1818
        %v1820 = vpop.f32.mrb[0].mxu0
        %1821 = vmatprep.mubr.f32.mxu0 0.0
        %1822 = vmatmul.mubr.f32.gmra.mrb[0].mxu0 %v1745
        %v1823 = vpop.f32.mrb[0].mxu0
        %v1824 = vadd.f32 %v1750, %v1823
        %v1825 = vpop.f32.mrb[0].mxu0
        %1826 = vdwg.mxu0
        %v1827 = vadd.f32 %v1311, %v1819
        %v1828 = vadd.f32 %v1312, %v1824
        %1829 = vadd.xlane.f32.xlu0 %v1827
        %v1830 = vpop.xlane.xlu0 %1829
        %1831 = vadd.xlane.f32.xlu0 %v1828
        %v1832 = vpop.xlane.xlu0 %1831
        %v1833 = vmul.f32 %v1830, %v1065
        %v1834 = vmul.f32 %v1832, %v1065
        %v1835 = vsub.f32 %v1827, %v1833
        %v1836 = vsub.f32 %v1828, %v1834
        %v1837 = vmul.f32 %v1835, %v1835
        %v1838 = vmul.f32 %v1836, %v1836
        %1839 = vadd.xlane.f32.xlu0 %v1837
        %v1840 = vpop.xlane.xlu0 %1839
        %1841 = vadd.xlane.f32.xlu0 %v1838
        %v1842 = vpop.xlane.xlu0 %1841
        %v1843 = vmul.f32 %v1840, %v1065
        %v1844 = vmul.f32 %v1842, %v1065
        %v1845 = vadd.f32 %v1843, 1e-05
        %v1846 = vadd.f32 %v1844, 1e-05
        %v1847 = vrsqrt.pop %v1845
        %v1848 = vrsqrt.pop %v1846
        %v1849 = vmul.f32 %v1835, %v1847
        %v1850 = vmul.f32 %v1836, %v1848
        %v1852 = vlaneseq
        %v1853 = vshrl.u32 %v1852, 7
        %v1854 = vsub.s32 0, %v1853
        %v1855 = vrot.slane %v1454, %v1854
        %v1857 = vmul.f32 %v1849, %v1855
        %v1858 = vmul.f32 %v1850, %v1855
        %v1860 = vlaneseq
        %v1861 = vshrl.u32 %v1860, 7
        %v1862 = vsub.s32 0, %v1861
        %v1863 = vrot.slane %v1456, %v1862
        %v1865 = vadd.f32 %v1857, %v1863
        %v1866 = vadd.f32 %v1858, %v1863
        %v1868 = vlaneseq
        %v1869 = vshrl.u32 %v1868, 7
        %v1870 = vsub.s32 0, %v1869
        %v1871 = vrot.slane %v1417, %v1870
        %v1872 = vlaneseq
        %v1873 = vshrl.u32 %v1872, 7
        %v1874 = vsub.s32 1, %v1873
        %v1875 = vrot.slane %v1417, %v1874
        %1878 = vmatprep.subr.mxu0 %v1385
        %1879 = vmatpush1.msra.mxu0 %v1384
        %1880 = vmatprep.subr.mxu0 %v1387
        %1881 = vmatpush1.msra.mxu0 %v1386
        %1882 = vmatprep.subr.mxu0 %v1389
        %1883 = vmatpush1.msra.mxu0 %v1388
        %1884 = vmatprep.subr.mxu0 %v1391
        %1885 = vmatpush1.msra.mxu0 %v1390
        %1886 = vmatprep.subr.mxu0 %v1393
        %1887 = vmatpush1.msra.mxu0 %v1392
        %1888 = vmatprep.subr.mxu0 %v1395
        %1889 = vmatpush1.msra.mxu0 %v1394
        %1890 = vmatprep.subr.mxu0 %v1397
        %1891 = vmatpush1.msra.mxu0 %v1396
        %1892 = vmatprep.subr.mxu0 %v1399
        %1893 = vmatpush1.msra.mxu0 %v1398
        %1894 = vmatprep.subr.mxu0 %v1401
        %1895 = vmatpush1.msra.mxu0 %v1400
        %1896 = vmatprep.subr.mxu0 %v1403
        %1897 = vmatpush1.msra.mxu0 %v1402
        %1898 = vmatprep.subr.mxu0 %v1405
        %1899 = vmatpush1.msra.mxu0 %v1404
        %1900 = vmatprep.subr.mxu0 %v1407
        %1901 = vmatpush1.msra.mxu0 %v1406
        %1902 = vmatprep.subr.mxu0 %v1409
        %1903 = vmatpush1.msra.mxu0 %v1408
        %1904 = vmatprep.subr.mxu0 %v1411
        %1905 = vmatpush1.msra.mxu0 %v1410
        %1906 = vmatprep.subr.mxu0 %v1413
        %1907 = vmatpush1.msra.mxu0 %v1412
        %1908 = vmatprep.subr.mxu0 %v1415
        %1909 = vmatpush1.msra.mxu0 %v1414
        %1910 = vmatprep.subr.mxu0 0.0
        %1911 = vmatpush1.msra.mxu0 0.0
        %1912 = vmatprep.subr.mxu0 0.0
        %1913 = vmatpush1.msra.mxu0 0.0
        %1914 = vmatprep.subr.mxu0 0.0
        %1915 = vmatpush1.msra.mxu0 0.0
        %1916 = vmatprep.subr.mxu0 0.0
        %1917 = vmatpush1.msra.mxu0 0.0
        %1918 = vmatprep.subr.mxu0 0.0
        %1919 = vmatpush1.msra.mxu0 0.0
        %1920 = vmatprep.subr.mxu0 0.0
        %1921 = vmatpush1.msra.mxu0 0.0
        %1922 = vmatprep.subr.mxu0 0.0
        %1923 = vmatpush1.msra.mxu0 0.0
        %1924 = vmatprep.subr.mxu0 0.0
        %1925 = vmatpush1.msra.mxu0 0.0
        %1926 = vmatprep.subr.mxu0 0.0
        %1927 = vmatpush1.msra.mxu0 0.0
        %1928 = vmatprep.subr.mxu0 0.0
        %1929 = vmatpush1.msra.mxu0 0.0
        %1930 = vmatprep.subr.mxu0 0.0
        %1931 = vmatpush1.msra.mxu0 0.0
        %1932 = vmatprep.subr.mxu0 0.0
        %1933 = vmatpush1.msra.mxu0 0.0
        %1934 = vmatprep.subr.mxu0 0.0
        %1935 = vmatpush1.msra.mxu0 0.0
        %1936 = vmatprep.subr.mxu0 0.0
        %1937 = vmatpush1.msra.mxu0 0.0
        %1938 = vmatprep.subr.mxu0 0.0
        %1939 = vmatpush1.msra.mxu0 0.0
        %1940 = vmatprep.subr.mxu0 0.0
        %1941 = vmatpush1.msra.mxu0 0.0
        %1942 = vmatprep.mubr.f32.mxu0 0.0
        %1943 = vmatmul.mubr.f32.gmra.mrb[0].mxu0 %v1865
        %v1944 = vpop.f32.mrb[0].mxu0
        %v1945 = vadd.f32 %v1871, %v1944
        %v1946 = vpop.f32.mrb[0].mxu0
        %v1947 = vadd.f32 %v1875, %v1946
        %1948 = vmatprep.mubr.f32.mxu0 0.0
        %1949 = vmatmul.mubr.f32.gmra.mrb[0].mxu0 %v1866
        %v1950 = vpop.f32.mrb[0].mxu0
        %v1951 = vadd.f32 %v1871, %v1950
        %v1952 = vpop.f32.mrb[0].mxu0
        %v1953 = vadd.f32 %v1875, %v1952
        %1954 = vdwg.mxu0
        %v1955 = vmax.f32 %v1945, 0.0
        %v1956 = vmax.f32 %v1947, 0.0
        %v1957 = vmax.f32 %v1951, 0.0
        %v1958 = vmax.f32 %v1953, 0.0
        %v1960 = vlaneseq
        %v1961 = vshrl.u32 %v1960, 7
        %v1962 = vsub.s32 0, %v1961
        %v1963 = vrot.slane %v1452, %v1962
        %1965 = vmatprep.subr.mxu0 0.0
        %1966 = vmatpush1.msra.mxu0 %v1419
        %1967 = vmatprep.subr.mxu0 0.0
        %1968 = vmatpush1.msra.mxu0 %v1420
        %1969 = vmatprep.subr.mxu0 0.0
        %1970 = vmatpush1.msra.mxu0 %v1421
        %1971 = vmatprep.subr.mxu0 0.0
        %1972 = vmatpush1.msra.mxu0 %v1422
        %1973 = vmatprep.subr.mxu0 0.0
        %1974 = vmatpush1.msra.mxu0 %v1423
        %1975 = vmatprep.subr.mxu0 0.0
        %1976 = vmatpush1.msra.mxu0 %v1424
        %1977 = vmatprep.subr.mxu0 0.0
        %1978 = vmatpush1.msra.mxu0 %v1425
        %1979 = vmatprep.subr.mxu0 0.0
        %1980 = vmatpush1.msra.mxu0 %v1426
        %1981 = vmatprep.subr.mxu0 0.0
        %1982 = vmatpush1.msra.mxu0 %v1427
        %1983 = vmatprep.subr.mxu0 0.0
        %1984 = vmatpush1.msra.mxu0 %v1428
        %1985 = vmatprep.subr.mxu0 0.0
        %1986 = vmatpush1.msra.mxu0 %v1429
        %1987 = vmatprep.subr.mxu0 0.0
        %1988 = vmatpush1.msra.mxu0 %v1430
        %1989 = vmatprep.subr.mxu0 0.0
        %1990 = vmatpush1.msra.mxu0 %v1431
        %1991 = vmatprep.subr.mxu0 0.0
        %1992 = vmatpush1.msra.mxu0 %v1432
        %1993 = vmatprep.subr.mxu0 0.0
        %1994 = vmatpush1.msra.mxu0 %v1433
        %1995 = vmatprep.subr.mxu0 0.0
        %1996 = vmatpush1.msra.mxu0 %v1434
        %1997 = vmatprep.subr.mxu0 0.0
        %1998 = vmatpush1.msra.mxu0 %v1435
        %1999 = vmatprep.subr.mxu0 0.0
        %2000 = vmatpush1.msra.mxu0 %v1436
        %2001 = vmatprep.subr.mxu0 0.0
        %2002 = vmatpush1.msra.mxu0 %v1437
        %2003 = vmatprep.subr.mxu0 0.0
        %2004 = vmatpush1.msra.mxu0 %v1438
        %2005 = vmatprep.subr.mxu0 0.0
        %2006 = vmatpush1.msra.mxu0 %v1439
        %2007 = vmatprep.subr.mxu0 0.0
        %2008 = vmatpush1.msra.mxu0 %v1440
        %2009 = vmatprep.subr.mxu0 0.0
        %2010 = vmatpush1.msra.mxu0 %v1441
        %2011 = vmatprep.subr.mxu0 0.0
        %2012 = vmatpush1.msra.mxu0 %v1442
        %2013 = vmatprep.subr.mxu0 0.0
        %2014 = vmatpush1.msra.mxu0 %v1443
        %2015 = vmatprep.subr.mxu0 0.0
        %2016 = vmatpush1.msra.mxu0 %v1444
        %2017 = vmatprep.subr.mxu0 0.0
        %2018 = vmatpush1.msra.mxu0 %v1445
        %2019 = vmatprep.subr.mxu0 0.0
        %2020 = vmatpush1.msra.mxu0 %v1446
        %2021 = vmatprep.subr.mxu0 0.0
        %2022 = vmatpush1.msra.mxu0 %v1447
        %2023 = vmatprep.subr.mxu0 0.0
        %2024 = vmatpush1.msra.mxu0 %v1448
        %2025 = vmatprep.subr.mxu0 0.0
        %2026 = vmatpush1.msra.mxu0 %v1449
        %2027 = vmatprep.subr.mxu0 0.0
        %2028 = vmatpush1.msra.mxu0 %v1450
        %2029 = vmatprep.mubr.f32.mxu0 %v1956
        %2030 = vmatmul.mubr.f32.gmra.mrb[0].mxu0 %v1955
        %v2031 = vpop.f32.mrb[0].mxu0
        %v2032 = vadd.f32 %v1963, %v2031
        %v2033 = vpop.f32.mrb[0].mxu0
        %2034 = vmatprep.mubr.f32.mxu0 %v1958
        %2035 = vmatmul.mubr.f32.gmra.mrb[0].mxu0 %v1957
        %v2036 = vpop.f32.mrb[0].mxu0
        %v2037 = vadd.f32 %v1963, %v2036
        %v2038 = vpop.f32.mrb[0].mxu0
        %2039 = vdwg.mxu0
        %v2040 = vadd.f32 %v1865, %v2032
        %v2041 = vadd.f32 %v1866, %v2037
        %2042 = vadd.xlane.f32.xlu0 %v2040
        %v2043 = vpop.xlane.xlu0 %2042
        %2044 = vadd.xlane.f32.xlu0 %v2041
        %v2045 = vpop.xlane.xlu0 %2044
        %v2046 = vmul.f32 %v2043, %v1065
        %v2047 = vmul.f32 %v2045, %v1065
        %v2048 = vsub.f32 %v2040, %v2046
        %v2049 = vsub.f32 %v2041, %v2047
        %v2050 = vmul.f32 %v2048, %v2048
        %v2051 = vmul.f32 %v2049, %v2049
        %2052 = vadd.xlane.f32.xlu0 %v2050
        %v2053 = vpop.xlane.xlu0 %2052
        %2054 = vadd.xlane.f32.xlu0 %v2051
        %v2055 = vpop.xlane.xlu0 %2054
        %v2056 = vmul.f32 %v2053, %v1065
        %v2057 = vmul.f32 %v2055, %v1065
        %v2058 = vadd.f32 %v2056, 1e-05
        %v2059 = vadd.f32 %v2057, 1e-05
        %v2060 = vrsqrt.pop %v2058
        %v2061 = vrsqrt.pop %v2059
        %v2062 = vmul.f32 %v2048, %v2060
        %v2063 = vmul.f32 %v2049, %v2061
        %v2065 = vlaneseq
        %v2066 = vshrl.u32 %v2065, 7
        %v2067 = vsub.s32 0, %v2066
        %v2068 = vrot.slane %v1458, %v2067
        %v2070 = vmul.f32 %v2062, %v2068
        %v2071 = vmul.f32 %v2063, %v2068
        %v2073 = vlaneseq
        %v2074 = vshrl.u32 %v2073, 7
        %v2075 = vsub.s32 0, %v2074
        %v2076 = vrot.slane %v1460, %v2075
        %v2078 = vadd.f32 %v2070, %v2076
        %v2079 = vadd.f32 %v2071, %v2076
        %v2080 = vrot.slane %v2078, 4
        %v2081 = vadd.f32 %v2078, %v2080
        %v2082 = vrot.slane %v2081, 2
        %v2083 = vadd.f32 %v2081, %v2082
        %v2084 = vrot.slane %v2083, 1
        %v2085 = vadd.f32 %v2083, %v2084
        %v2086 = vrcp.pop 8.0
        %v2087 = vmul.f32 %v2085, %v2086
        %v2088 = vrot.slane %v2079, 4
        %v2089 = vadd.f32 %v2079, %v2088
        %v2090 = vrot.slane %v2089, 2
        %v2091 = vadd.f32 %v2089, %v2090
        %v2092 = vrot.slane %v2091, 1
        %v2093 = vadd.f32 %v2091, %v2092
        %v2094 = vmul.f32 %v2093, %v2086
        %vm2095 = vcmask 1040384
        %v2096 = vsel %vm2095, %v2087, %v2094
        %2097 = vst [vmem:[%s538] sm:$0x3] %v2096
        %p2098 = scmp.lt.s32.totalorder %s28, 1
        %s2099 = scalar_select %p2098, %s28, 1
        %s2100 = smul.addr %s2099, 2
        %s2101 = scalar_lea.vmem %s14, %s2100
        // Predicated region
        $region97: #{sentence_similarity.2} parent=75 // pred_check
          %p2102 = pneg %p345
        $region98: #{sentence_similarity.2} parent=75 // pred_check_branch
          %2104 = sbr.rel (%p2102) target = $region100
        $region99: #{sentence_similarity.2} parent=75 // pred_region
          _
        $region100: #{sentence_similarity.2} parent=75 // pred_fallthru
          _
      $region76: #{sentence_similarity.2} parent=5 // pred_fallthru
        _
      %p2105 = scmp.le.s32.totalorder 2, %s23
      // Predicated region
      $region101: #{sentence_similarity.2} parent=5 // pred_check
        %p2106 = pneg %p2105
      $region102: #{sentence_similarity.2} parent=5 // pred_check_branch
        %2108 = sbr.rel (%p2106) target = $region104
      $region103: #{sentence_similarity.2} parent=5 // pred_region
        %s2109 = ssub.s32 %s23, 2
        // Predicated region
        $region105: #{sentence_similarity.2} parent=103 // pred_check
          %p2110 = pneg %p351
        $region106: #{sentence_similarity.2} parent=103 // pred_check_branch
          %2112 = sbr.rel (%p2110) target = $region108
        $region107: #{sentence_similarity.2} parent=103 // pred_region
          %p2113 = scmp.lt.s32.totalorder %s29, 1
          %s2114 = scalar_select %p2113, %s29, 1
          %s2115 = smul.addr %s2114, 2
          %s2116 = scalar_lea.vmem %s14, %s2115
        $region108: #{sentence_similarity.2} parent=103 // pred_fallthru
          _
      $region104: #{sentence_similarity.2} parent=5 // pred_fallthru
        _
    $region6: #{sentence_similarity.2} parent=1 // loop_footer
      %s27 = sadd.s32 1, %s23
    $region7: #{sentence_similarity.2} parent=1 // loop_footer_branch
      %22 = sbr.rel target = $region3
    $region8: #{sentence_similarity.2} parent=1 // loop_exit
      _
    %2117 = vsyncpa [#allocation3], 1
    %s2118 = scalar_lea.sflag [#allocation3], 1
    %2119 = vsyncpa %s2118, 1
    %2120 = vsyncpa [#allocation5], 1
    %2121 = vsyncpa [#allocation8], 1

</llo_original>
